<compile_context>
chip_gen: v6e
topology: v6e:2x2x1
jax: 0.10.0
libtpu: 0.0.40
codegen_flags: <defaults>
</compile_context>

<pallas_src>
import jax
import jax.numpy as jnp
from jax import lax
from jax.experimental import pallas as pl
from jax.experimental.pallas import tpu as pltpu
import numpy as np


def _self_attention_kernel(x_ref, m_ref, kb_ref, wv_ref, bv_ref, gamma_ref,
                           out_ref, attn_ref, v_sc, kc_sc):
    """One grid step == one (batch, query-tile).

    x_ref    : (C, N)   full feature map of this batch element (channels, space)
    m_ref    : (C, C)   folded Wq @ Wk^T
    kb_ref   : (1, C)   folded Wk @ bq  (key-side bias correction)
    wv_ref   : (C, C)   value projection, (in, out) orientation
    bv_ref   : (C, 1)   value bias
    gamma_ref: (1,)     scalar gate (SMEM)
    out_ref  : (C, TQ)  output tile (gamma * attn_out + x)
    attn_ref : (TQ, N)  attention rows for this query tile
    v_sc     : (C, N)   scratch: value projection, computed once per batch
    kc_sc    : (1, N)   scratch: key bias correction, computed once per batch
    """
    qi = pl.program_id(1)
    tq = out_ref.shape[1]
    x_cn = x_ref[...]                                                 # (C, N)

    @pl.when(qi == 0)
    def _():
        # V[c', m] = sum_c wv[c, c'] * x[c, m] + bv[c']
        v_sc[...] = lax.dot_general(
            wv_ref[...], x_cn, (((0,), (0,)), ((), ())),
            preferred_element_type=jnp.float32) + bv_ref[...]
        # kc[m] = sum_c (Wk @ bq)[c] * x[c, m]
        kc_sc[...] = lax.dot_general(
            kb_ref[...], x_cn, (((1,), (0,)), ((), ())),
            preferred_element_type=jnp.float32)

    start = pl.multiple_of(qi * tq, tq)
    x_q = x_ref[:, pl.ds(start, tq)]                                  # (C, TQ)

    # energy[t, m] = x_q[:, t]^T (Wq Wk^T) x[:, m] + x[:, m] . (Wk bq)
    # (query-row-constant bias terms are dropped; they cancel in softmax over m)
    xqm = lax.dot_general(x_q, m_ref[...], (((0,), (0,)), ((), ())),
                          preferred_element_type=jnp.float32)         # (TQ, C)
    energy = lax.dot_general(xqm, x_cn, (((1,), (0,)), ((), ())),
                             preferred_element_type=jnp.float32)      # (TQ, N)
    energy = energy + kc_sc[...]                                      # (1,N) bcast

    # numerically-stable softmax over the key axis
    e_max = jnp.max(energy, axis=-1, keepdims=True)
    p = jnp.exp(energy - e_max)
    inv = pl.reciprocal(jnp.sum(p, axis=-1, keepdims=True), approx=True)
    attn = p * inv                                                    # (TQ, N)
    attn_ref[...] = attn

    # out[c, t] = sum_m V[c, m] * attn[t, m]
    out_ct = lax.dot_general(v_sc[...], attn, (((1,), (1,)), ((), ())),
                             preferred_element_type=jnp.float32)      # (C, TQ)
    out_ref[...] = gamma_ref[0] * out_ct + x_q


def _pick_tq(n):
    # out-block last dim must be a multiple of 128 (or the full spatial extent).
    # On v7x (64 MiB VMEM) prefer the smaller tile for very large N.
    for tq in (256, 128):
        if n % tq == 0:
            return tq
    return n


def self_attention_pallas(x_nchw, wq, bq, wk, bk, wv, bv, gamma, *, tq=None):
    """x_nchw: (B, C, W, H) f32. Returns (out (B,C,W,H), attention (B,N,N))."""
    B, C, W, H = x_nchw.shape
    N = W * H
    if tq is None:
        tq = _pick_tq(N)
    assert N % tq == 0, "query tile must divide W*H"
    n_q = N // tq

    x_bcn = x_nchw.reshape(B, C, N).astype(jnp.float32)   # reshape only, no transpose

    # Fold the low-rank Q/K projections (wq, wk are (C_in, C//8) matrices).
    m_fold = (wq @ wk.T).astype(jnp.float32)              # (C, C)
    kb_fold = (wk @ bq).reshape(1, C).astype(jnp.float32)  # (1, C)
    wv_f = wv.astype(jnp.float32)                          # (C_in, C_out)
    bv_f = bv.reshape(C, 1).astype(jnp.float32)
    g1 = jnp.asarray(gamma, jnp.float32).reshape(1,)

    # VMEM budget: double-buffered blocks + persistent scratch + slack.
    blk_bytes = 2 * 4 * (C * N + tq * N + C * tq + 2 * C * C + 2 * C)
    scratch_bytes = 4 * (C * N + N)
    vmem_limit = int(min(max(blk_bytes + scratch_bytes + (4 << 20), 32 << 20),
                         96 << 20))

    out_bcn, attn = pl.pallas_call(
        _self_attention_kernel,
        out_shape=(
            jax.ShapeDtypeStruct((B, C, N), jnp.float32),
            jax.ShapeDtypeStruct((B, N, N), jnp.float32),
        ),
        grid_spec=pltpu.PrefetchScalarGridSpec(
            num_scalar_prefetch=0,
            grid=(B, n_q),
            in_specs=[
                pl.BlockSpec((None, C, N), lambda b, q: (b, 0, 0)),    # x (full / batch)
                pl.BlockSpec((C, C), lambda b, q: (0, 0)),             # Wq @ Wk^T
                pl.BlockSpec((1, C), lambda b, q: (0, 0)),             # Wk @ bq
                pl.BlockSpec((C, C), lambda b, q: (0, 0)),             # Wv
                pl.BlockSpec((C, 1), lambda b, q: (0, 0)),             # bv
                pl.BlockSpec(memory_space=pltpu.MemorySpace.SMEM),     # gamma (scalar)
            ],
            out_specs=[
                pl.BlockSpec((None, C, tq), lambda b, q: (b, 0, q)),   # out, lane-dense
                pl.BlockSpec((None, tq, N), lambda b, q: (b, q, 0)),   # attention
            ],
            scratch_shapes=[
                pltpu.VMEM((C, N), jnp.float32),   # value projection V
                pltpu.VMEM((1, N), jnp.float32),   # key-side bias correction
            ],
        ),
        compiler_params=pltpu.CompilerParams(
            dimension_semantics=("parallel", "arbitrary"),
            vmem_limit_bytes=vmem_limit,
        ),
    )(x_bcn, m_fold, kb_fold, wv_f, bv_f, g1)

    out = out_bcn.reshape(B, C, W, H)
    return out, attn


def self_attention_reference(x_nchw, wq, bq, wk, bk, wv, bv, gamma):
    """Pure-JAX replica of the PyTorch forward (for verification)."""
    B, C, W, H = x_nchw.shape
    N = W * H
    x_flat = x_nchw.reshape(B, C, N)                                    # (B, C, N)
    pq = jnp.einsum('bcn,cd->bdn', x_flat, wq) + bq[None, :, None]      # (B, Cq, N)
    pk = jnp.einsum('bcn,cd->bdn', x_flat, wk) + bk[None, :, None]      # (B, Cq, N)
    pv = jnp.einsum('bcn,cd->bdn', x_flat, wv) + bv[None, :, None]      # (B, C, N)
    energy = jnp.einsum('bdn,bdm->bnm', pq, pk)                          # (B, N, N)
    attn = jax.nn.softmax(energy, axis=-1)
    out = jnp.einsum('bcm,bnm->bcn', pv, attn)                           # (B, C, N)
    out = out.reshape(B, C, W, H)
    out = gamma * out + x_nchw
    return out, attn


if __name__ == "__main__":
    key = jax.random.PRNGKey(0)
    B, C, W, H = 2, 16, 16, 16        # in_dim = 16 -> Cq = 2 ; N = W*H = 256
    Cq = C // 8
    N = W * H

    k_x, k_wq, k_bq, k_wk, k_bk, k_wv, k_bv = jax.random.split(key, 7)
    x = jax.random.normal(k_x, (B, C, W, H), dtype=jnp.float32)

    # 1x1 conv weights (out, in, 1, 1) expressed directly as (in, out) matrices.
    scale = 1.0 / np.sqrt(C)
    wq = jax.random.normal(k_wq, (C, Cq), dtype=jnp.float32) * scale
    bq = jax.random.normal(k_bq, (Cq,), dtype=jnp.float32) * scale
    wk = jax.random.normal(k_wk, (C, Cq), dtype=jnp.float32) * scale
    bk = jax.random.normal(k_bk, (Cq,), dtype=jnp.float32) * scale
    wv = jax.random.normal(k_wv, (C, C), dtype=jnp.float32) * scale
    bv = jax.random.normal(k_bv, (C,), dtype=jnp.float32) * scale
    # PyTorch init is gamma=0 (out == x); use a nonzero value so the attention
    # path actually contributes to the verified output.
    gamma = jnp.float32(0.5)

    # tq=128 -> grid (B, 2): exercises the per-batch K/V scratch reuse path.
    out, attn = self_attention_pallas(x, wq, bq, wk, bk, wv, bv, gamma, tq=128)
    out, attn = jax.block_until_ready((out, attn))

    ref_out, ref_attn = self_attention_reference(x, wq, bq, wk, bk, wv, bv, gamma)
    # Folded Q/K projection + approx reciprocal shift numerics slightly -> 2e-3 tol.
    np.testing.assert_allclose(np.asarray(attn), np.asarray(ref_attn),
                               rtol=2e-3, atol=2e-3)
    np.testing.assert_allclose(np.asarray(out), np.asarray(ref_out),
                               rtol=2e-3, atol=2e-3)
    # attention rows sum to 1
    np.testing.assert_allclose(np.asarray(attn).sum(-1), 1.0, rtol=2e-3, atol=2e-3)

    print("KERNEL_OK")
</pallas_src>

<mosaic_0001>
module attributes {stable_mosaic.version = 11 : i64} {
  func.func @_self_attention_kernel(%arg0: i32, %arg1: i32, %arg2: memref<1x16x256xf32, #tpu.memory_space<vmem>>, %arg3: memref<16x16xf32, #tpu.memory_space<vmem>>, %arg4: memref<1x16xf32, #tpu.memory_space<vmem>>, %arg5: memref<16x16xf32, #tpu.memory_space<vmem>>, %arg6: memref<16x1xf32, #tpu.memory_space<vmem>>, %arg7: memref<1xf32, #tpu.memory_space<smem>>, %arg8: memref<1x16x128xf32, #tpu.memory_space<vmem>>, %arg9: memref<1x128x256xf32, #tpu.memory_space<vmem>>, %arg10: memref<16x256xf32, #tpu.memory_space<vmem>>, %arg11: memref<1x256xf32, #tpu.memory_space<vmem>>) attributes {dimension_semantics = [#tpu.dimension_semantics<parallel>, #tpu.dimension_semantics<arbitrary>], iteration_bounds = array<i64: 2, 2>, scalar_prefetch = 0 : i64, scratch_operands = 2 : i64, tpu.core_type = #tpu.core_type<tc>, window_params = [{transform_indices = @transform_0, window_bounds = array<i64: 1, 16, 256>}, {pipeline_mode = #tpu.pipeline_mode<synchronous>, transform_indices = @transform_1, window_bounds = array<i64: 16, 16>}, {pipeline_mode = #tpu.pipeline_mode<synchronous>, transform_indices = @transform_2, window_bounds = array<i64: 1, 16>}, {pipeline_mode = #tpu.pipeline_mode<synchronous>, transform_indices = @transform_3, window_bounds = array<i64: 16, 16>}, {pipeline_mode = #tpu.pipeline_mode<synchronous>, transform_indices = @transform_4, window_bounds = array<i64: 16, 1>}, {transform_indices = @transform_5, window_bounds = array<i64: 1>}, {transform_indices = @transform_6, window_bounds = array<i64: 1, 16, 128>}, {transform_indices = @transform_7, window_bounds = array<i64: 1, 128, 256>}]} {
    %c0 = arith.constant 0 : index
    %c0_0 = arith.constant 0 : index
    %c0_1 = arith.constant 0 : index
    %0 = vector.load %arg2[%c0, %c0_0, %c0_1] : memref<1x16x256xf32, #tpu.memory_space<vmem>>, vector<1x16x256xf32>
    %1 = vector.shape_cast %0 : vector<1x16x256xf32> to vector<16x256xf32>
    %c0_i32 = arith.constant 0 : i32
    %2 = arith.cmpi eq, %arg1, %c0_i32 : i32
    %3 = arith.extui %2 : i1 to i32
    %c0_i32_2 = arith.constant 0 : i32
    %4 = arith.cmpi ne, %3, %c0_i32_2 : i32
    scf.if %4 {
      %c0_22 = arith.constant 0 : index
      %c0_23 = arith.constant 0 : index
      %38 = vector.load %arg5[%c0_22, %c0_23] : memref<16x16xf32, #tpu.memory_space<vmem>>, vector<16x16xf32>
      %cst_24 = arith.constant dense<0.000000e+00> : vector<16x256xf32>
      %39 = tpu.matmul %38, %1, %cst_24 {dimension_numbers = #tpu.dot_dimension_numbers<[0], [0], [1], [1], [0, 1, 1, 1], [], []>} : vector<16x16xf32>, vector<16x256xf32>, vector<16x256xf32> -> vector<16x256xf32>
      %c0_25 = arith.constant 0 : index
      %c0_26 = arith.constant 0 : index
      %40 = vector.load %arg6[%c0_25, %c0_26] : memref<16x1xf32, #tpu.memory_space<vmem>>, vector<16x1xf32>
      %41 = vector.broadcast %40 : vector<16x1xf32> to vector<16x256xf32>
      %42 = arith.addf %39, %41 : vector<16x256xf32>
      %c0_27 = arith.constant 0 : index
      %c0_28 = arith.constant 0 : index
      %43 = vector.load %arg10[%c0_27, %c0_28] : memref<16x256xf32, #tpu.memory_space<vmem>>, vector<16x256xf32>
      tpu.vector_store %arg10[%c0_27, %c0_28], %42 {strides = array<i32>} : memref<16x256xf32, #tpu.memory_space<vmem>>, vector<16x256xf32>,
      %c0_29 = arith.constant 0 : index
      %c0_30 = arith.constant 0 : index
      %44 = vector.load %arg4[%c0_29, %c0_30] : memref<1x16xf32, #tpu.memory_space<vmem>>, vector<1x16xf32>
      %cst_31 = arith.constant dense<0.000000e+00> : vector<1x256xf32>
      %45 = tpu.matmul %44, %1, %cst_31 {dimension_numbers = #tpu.dot_dimension_numbers<[1], [0], [0], [1], [0, 0, 1, 1], [], []>} : vector<1x16xf32>, vector<16x256xf32>, vector<1x256xf32> -> vector<1x256xf32>
      %c0_32 = arith.constant 0 : index
      %c0_33 = arith.constant 0 : index
      %46 = vector.load %arg11[%c0_32, %c0_33] : memref<1x256xf32, #tpu.memory_space<vmem>>, vector<1x256xf32>
      tpu.vector_store %arg11[%c0_32, %c0_33], %45 {strides = array<i32>} : memref<1x256xf32, #tpu.memory_space<vmem>>, vector<1x256xf32>,
    } else {
    }
    %c128_i32 = arith.constant 128 : i32
    %5 = arith.muli %arg1, %c128_i32 : i32
    %6 = tpu.assume_multiple %5, 128 : i32
    %c0_3 = arith.constant 0 : index
    %c0_4 = arith.constant 0 : index
    %7 = arith.index_cast %6 : i32 to index
    %8 = vector.load %arg2[%c0_3, %c0_4, %7] : memref<1x16x256xf32, #tpu.memory_space<vmem>>, vector<1x16x128xf32>
    %9 = vector.shape_cast %8 : vector<1x16x128xf32> to vector<16x128xf32>
    %c0_5 = arith.constant 0 : index
    %c0_6 = arith.constant 0 : index
    %10 = vector.load %arg3[%c0_5, %c0_6] : memref<16x16xf32, #tpu.memory_space<vmem>>, vector<16x16xf32>
    %cst = arith.constant dense<0.000000e+00> : vector<128x16xf32>
    %11 = tpu.matmul %9, %10, %cst {dimension_numbers = #tpu.dot_dimension_numbers<[0], [0], [1], [1], [0, 1, 1, 1], [], []>} : vector<16x128xf32>, vector<16x16xf32>, vector<128x16xf32> -> vector<128x16xf32>
    %cst_7 = arith.constant dense<0.000000e+00> : vector<128x256xf32>
    %12 = tpu.matmul %11, %1, %cst_7 {dimension_numbers = #tpu.dot_dimension_numbers<[1], [0], [0], [1], [0, 0, 1, 1], [], []>} : vector<128x16xf32>, vector<16x256xf32>, vector<128x256xf32> -> vector<128x256xf32>
    %c0_8 = arith.constant 0 : index
    %c0_9 = arith.constant 0 : index
    %13 = vector.load %arg11[%c0_8, %c0_9] : memref<1x256xf32, #tpu.memory_space<vmem>>, vector<1x256xf32>
    %14 = vector.broadcast %13 : vector<1x256xf32> to vector<128x256xf32>
    %15 = arith.addf %12, %14 : vector<128x256xf32>
    %cst_10 = arith.constant dense<0xFF800000> : vector<128xf32>
    %16 = vector.multi_reduction <maximumf>, %15, %cst_10 [1] : vector<128x256xf32> to vector<128xf32>
    %17 = vector.shape_cast %16 : vector<128xf32> to vector<128x1xf32>
    %18 = vector.broadcast %17 : vector<128x1xf32> to vector<128x256xf32>
    %19 = arith.subf %15, %18 : vector<128x256xf32>
    %20 = math.exp %19 : vector<128x256xf32>
    %cst_11 = arith.constant dense<0.000000e+00> : vector<128xf32>
    %21 = vector.multi_reduction <add>, %20, %cst_11 [1] : vector<128x256xf32> to vector<128xf32>
    %22 = vector.shape_cast %21 : vector<128xf32> to vector<128x1xf32>
    %23 = tpu.reciprocal %22 {approx = true} : vector<128x1xf32> -> vector<128x1xf32>
    %24 = vector.broadcast %23 : vector<128x1xf32> to vector<128x256xf32>
    %25 = arith.mulf %20, %24 : vector<128x256xf32>
    %c0_12 = arith.constant 0 : index
    %c0_13 = arith.constant 0 : index
    %c0_14 = arith.constant 0 : index
    %26 = vector.load %arg9[%c0_12, %c0_13, %c0_14] : memref<1x128x256xf32, #tpu.memory_space<vmem>>, vector<1x128x256xf32>
    %27 = vector.shape_cast %26 : vector<1x128x256xf32> to vector<128x256xf32>
    %28 = vector.shape_cast %25 : vector<128x256xf32> to vector<1x128x256xf32>
    tpu.vector_store %arg9[%c0_12, %c0_13, %c0_14], %28 {strides = array<i32>} : memref<1x128x256xf32, #tpu.memory_space<vmem>>, vector<1x128x256xf32>,
    %c0_15 = arith.constant 0 : index
    %c0_16 = arith.constant 0 : index
    %29 = vector.load %arg10[%c0_15, %c0_16] : memref<16x256xf32, #tpu.memory_space<vmem>>, vector<16x256xf32>
    %cst_17 = arith.constant dense<0.000000e+00> : vector<16x128xf32>
    %30 = tpu.matmul %29, %25, %cst_17 {dimension_numbers = #tpu.dot_dimension_numbers<[1], [1], [0], [0], [0, 0, 1, 0], [], []>} : vector<16x256xf32>, vector<128x256xf32>, vector<16x128xf32> -> vector<16x128xf32>
    %c0_18 = arith.constant 0 : index
    %31 = memref.load %arg7[%c0_18] : memref<1xf32, #tpu.memory_space<smem>>
    %32 = vector.broadcast %31 : f32 to vector<16x128xf32>
    %33 = arith.mulf %32, %30 : vector<16x128xf32>
    %34 = arith.addf %33, %9 : vector<16x128xf32>
    %c0_19 = arith.constant 0 : index
    %c0_20 = arith.constant 0 : index
    %c0_21 = arith.constant 0 : index
    %35 = vector.load %arg8[%c0_19, %c0_20, %c0_21] : memref<1x16x128xf32, #tpu.memory_space<vmem>>, vector<1x16x128xf32>
    %36 = vector.shape_cast %35 : vector<1x16x128xf32> to vector<16x128xf32>
    %37 = vector.shape_cast %34 : vector<16x128xf32> to vector<1x16x128xf32>
    tpu.vector_store %arg8[%c0_19, %c0_20, %c0_21], %37 {strides = array<i32>} : memref<1x16x128xf32, #tpu.memory_space<vmem>>, vector<1x16x128xf32>,
    return
  }
  func.func @transform_0(%arg0: i32, %arg1: i32) -> (i32, i32, i32) {
    %c0_i32 = arith.constant 0 : i32
    %c0_i32_0 = arith.constant 0 : i32
    %c0_i32_1 = arith.constant 0 : i32
    return %arg0, %c0_i32, %c0_i32_0 : i32, i32, i32
  }
  func.func @transform_1(%arg0: i32, %arg1: i32) -> (i32, i32) {
    %c0_i32 = arith.constant 0 : i32
    %c0_i32_0 = arith.constant 0 : i32
    %c0_i32_1 = arith.constant 0 : i32
    return %c0_i32, %c0_i32_0 : i32, i32
  }
  func.func @transform_2(%arg0: i32, %arg1: i32) -> (i32, i32) {
    %c0_i32 = arith.constant 0 : i32
    %c0_i32_0 = arith.constant 0 : i32
    %c0_i32_1 = arith.constant 0 : i32
    return %c0_i32, %c0_i32_0 : i32, i32
  }
  func.func @transform_3(%arg0: i32, %arg1: i32) -> (i32, i32) {
    %c0_i32 = arith.constant 0 : i32
    %c0_i32_0 = arith.constant 0 : i32
    %c0_i32_1 = arith.constant 0 : i32
    return %c0_i32, %c0_i32_0 : i32, i32
  }
  func.func @transform_4(%arg0: i32, %arg1: i32) -> (i32, i32) {
    %c0_i32 = arith.constant 0 : i32
    %c0_i32_0 = arith.constant 0 : i32
    %c0_i32_1 = arith.constant 0 : i32
    return %c0_i32, %c0_i32_0 : i32, i32
  }
  func.func @transform_5(%arg0: i32, %arg1: i32) -> i32 {
    %c0_i32 = arith.constant 0 : i32
    %c0_i32_0 = arith.constant 0 : i32
    return %c0_i32 : i32
  }
  func.func @transform_6(%arg0: i32, %arg1: i32) -> (i32, i32, i32) {
    %c0_i32 = arith.constant 0 : i32
    %c0_i32_0 = arith.constant 0 : i32
    return %arg0, %c0_i32, %arg1 : i32, i32, i32
  }
  func.func @transform_7(%arg0: i32, %arg1: i32) -> (i32, i32, i32) {
    %c0_i32 = arith.constant 0 : i32
    %c0_i32_0 = arith.constant 0 : i32
    return %arg0, %arg1, %c0_i32 : i32, i32, i32
  }
}

</mosaic_0001>

<llo_original>
// kernel: tpu_custom_call.1
$region0: #{tpu_custom_call.1}
  #allocation0 [shape = 'u32[]', space=smem, size = 0x4, offset = 0x4, fixed_abs, tag = 'smem constant byte address 0x4 - core index']
  #allocation1 [shape = 'u32[144,128]{1,0:T(1,128)}', space=vmem, size = 0x12000, scoped, tag = 'internal scratch']
  #allocation2 [shape = 'f32[16,256]{1,0:T(8,128)}', space=vmem, size = 0x4000, scoped, tag = 'scratch operand']
  #allocation3 [shape = 'f32[1,256]{1,0:T(1,128)}', space=vmem, size = 0x400, scoped, tag = 'scratch operand']
  #allocation4 [shape = 'f32[1]{0:T(128)S(6)}', space=smem, size = 0x200, scoped, tag = 'scoped memory for tpu_custom_call.1']
  %s0 = inlined_call_operand.hbm [shape: f32[2,16,256], index: 0, kind: input, shape index: {}]
  %s1 = inlined_call_operand.vmem [shape: f32[16,16], index: 1, kind: input, shape index: {}]
  %s2 = inlined_call_operand.vmem [shape: f32[1,16], index: 2, kind: input, shape index: {}]
  %s3 = inlined_call_operand.hbm [shape: f32[16,16], index: 3, kind: input, shape index: {}]
  %s4 = inlined_call_operand.vmem [shape: f32[16,1], index: 4, kind: input, shape index: {}]
  %s5 = inlined_call_operand.<no memory space> [shape: f32[1], index: 5, kind: input, shape index: {}]
  %s6 = inlined_call_operand.hbm [shape: f32[2,16,256], index: 6, kind: output, shape index: {0}]
  %s7 = inlined_call_operand.hbm [shape: f32[2,256,256], index: 7, kind: output, shape index: {1}]
  %8 = xla_tuple %s6, %s7
  %s9 = sld [smem:[#allocation0]]
  $region77: #{tpu_custom_call.1} parent=0
    _
  %s11 = ssub.s32 1, %s9
  %s12 = scalar_select 0, %s11, %s9
  %13 = sst [smem:[#allocation4]] %s5
  $region1: #{tpu_custom_call.1} parent=0
    #allocation5 [shape = 'u8[32768]{0}', space=vmem, size = 0x8000, scoped, tag = 'input window, operand 0']
    #allocation6 [shape = 's32[2]{0}', space=sflag, size = 0x8, scoped, tag = 'scoped memory for tpu_custom_call.1']
    #allocation7 [shape = 's32[2]{0}', space=sflag, size = 0x8, scoped, tag = 'scoped memory for tpu_custom_call.1']
    #allocation8 [shape = 'u8[8192]{0}', space=vmem, size = 0x2000, scoped, tag = 'input window, operand 3, single buffered']
    #allocation9 [shape = 's32[1]{0}', space=sflag, size = 0x4, scoped, tag = 'scoped memory for tpu_custom_call.1']
    #allocation10 [shape = 'u8[16384]{0}', space=vmem, size = 0x4000, scoped, tag = 'output window, operand 0']
    #allocation11 [shape = 'u8[262144]{0}', space=vmem, size = 0x40000, scoped, tag = 'output window, operand 1']
    #allocation12 [shape = 's32[2]{0}', space=sflag, size = 0x8, scoped, tag = 'scoped memory for tpu_custom_call.1']
    %14 = vsyncpa [#allocation6], 0
    %s15 = scalar_lea.sflag [#allocation6], 1
    %16 = vsyncpa %s15, 0
    %17 = vsyncpa [#allocation9], 0
    %18 = vsyncpa [#allocation7], 0
    %s19 = scalar_lea.sflag [#allocation7], 1
    %20 = vsyncpa %s19, 0
    %21 = vsyncpa [#allocation12], 0
    %s22 = scalar_lea.sflag [#allocation12], 1
    %23 = vsyncpa %s22, 0
    loop: start=0, step=1, limit=6
    $region2: #{tpu_custom_call.1} parent=1 // loop_pre_header
      _
    $region3: #{tpu_custom_call.1} parent=1 // loop_header
      %s25 = sphi 0, %s29
      %p26 = scmp.ge.s32.totalorder %s25, 6
      %s32 = sphi 0, %s44
      %s33 = sphi 0, %s40
      %s34 = sphi 0, %s32
      %s35 = sphi 0, %s33
      %s36 = sphi 0, %s34
      %s37 = sphi 0, %s35
      %s47 = sphi 0, %s49
      %s50 = sphi 0, %s47
      %s51 = sphi 0, %s50
      %s67 = sphi 0, %s51
      %s71 = sphi 0, %s71
      %s73 = sphi 0, %s71
      %s74 = sphi 0, %s73
      %s88 = sphi 0, %s74
      %s92 = sphi 0, %s92
      %s94 = sphi 0, %s92
      %s95 = sphi 0, %s94
      %s109 = sphi 0, %s95
      %s113 = sphi 0, %s113
      %s115 = sphi 0, %s113
      %s116 = sphi 0, %s115
      %s130 = sphi 0, %s116
      %s134 = sphi 0, %s134
      %s136 = sphi 0, %s134
      %s137 = sphi 0, %s136
      %s151 = sphi 0, %s137
      %s155 = sphi 0, %s155
      %s157 = sphi 0, %s155
      %s158 = sphi 0, %s157
      %s172 = sphi 0, %s158
      %s180 = sphi 0, %s182
      %s183 = sphi 0, %s180
      %s184 = sphi 0, %s183
      %s200 = sphi 0, %s184
      %s208 = sphi 0, %s210
      %s211 = sphi 0, %s208
      %s212 = sphi 0, %s211
      %s228 = sphi 0, %s212
    $region4: #{tpu_custom_call.1} parent=1 // loop_header_branch
      %28 = sbr.rel (%p26) target = $region8
    $region5: #{tpu_custom_call.1} parent=1 // loop_body
      %s30 = ssub.s32 %s25, 1
      %s31 = ssub.s32 %s25, 2
      %s38 = sadd.s32 1, %s33
      %p39 = scmp.ge.s32.totalorder %s38, 2
      %s40 = scalar_select %p39, 0, %s38
      %s41 = sadd.s32 1, %s32
      %s42 = scalar_select %p39, %s41, %s32
      %p43 = scmp.ge.s32.totalorder %s42, 2
      %s44 = scalar_select %p43, 0, %s42
      %s45 = ssub.s32 %s32, %s44
      %p46 = scmp.eq.s32.totalorder %s45, 0
      %s48 = sadd.s32 %s47, 1
      %s49 = scalar_select %p46, %s47, %s48
      %p52 = pneg %p46
      %p53 = scmp.eq.s32.totalorder %s25, 3
      %p54 = por %p52, %p53
      %p55 = scmp.ne.s32.totalorder %s47, %s50
      %p56 = scmp.eq.s32.totalorder %s25, 0
      %p57 = por %p55, %p56
      %p58 = scmp.ne.s32.totalorder %s47, %s50
      %p59 = scmp.eq.s32.totalorder %s30, 3
      %p60 = por %p58, %p59
      %p61 = scmp.ne.s32.totalorder %s50, %s51
      %p62 = scmp.eq.s32.totalorder %s30, 0
      %p63 = por %p61, %p62
      %p64 = scmp.ne.s32.totalorder %s50, %s51
      %p65 = scmp.eq.s32.totalorder %s31, 3
      %p66 = por %p64, %p65
      %p68 = scmp.ne.s32.totalorder %s51, %s67
      %p69 = scmp.eq.s32.totalorder %s31, 0
      %p70 = por %p68, %p69
      %s72 = sadd.s32 %s71, 1
      %p75 = scmp.eq.s32.totalorder %s25, 3
      %p76 = scmp.ne.s32.totalorder %s71, %s73
      %p77 = scmp.eq.s32.totalorder %s25, 0
      %p78 = por %p76, %p77
      %p79 = scmp.ne.s32.totalorder %s71, %s73
      %p80 = scmp.eq.s32.totalorder %s30, 3
      %p81 = por %p79, %p80
      %p82 = scmp.ne.s32.totalorder %s73, %s74
      %p83 = scmp.eq.s32.totalorder %s30, 0
      %p84 = por %p82, %p83
      %p85 = scmp.ne.s32.totalorder %s73, %s74
      %p86 = scmp.eq.s32.totalorder %s31, 3
      %p87 = por %p85, %p86
      %p89 = scmp.ne.s32.totalorder %s74, %s88
      %p90 = scmp.eq.s32.totalorder %s31, 0
      %p91 = por %p89, %p90
      %s93 = sadd.s32 %s92, 1
      %p96 = scmp.eq.s32.totalorder %s25, 3
      %p97 = scmp.ne.s32.totalorder %s92, %s94
      %p98 = scmp.eq.s32.totalorder %s25, 0
      %p99 = por %p97, %p98
      %p100 = scmp.ne.s32.totalorder %s92, %s94
      %p101 = scmp.eq.s32.totalorder %s30, 3
      %p102 = por %p100, %p101
      %p103 = scmp.ne.s32.totalorder %s94, %s95
      %p104 = scmp.eq.s32.totalorder %s30, 0
      %p105 = por %p103, %p104
      %p106 = scmp.ne.s32.totalorder %s94, %s95
      %p107 = scmp.eq.s32.totalorder %s31, 3
      %p108 = por %p106, %p107
      %p110 = scmp.ne.s32.totalorder %s95, %s109
      %p111 = scmp.eq.s32.totalorder %s31, 0
      %p112 = por %p110, %p111
      %s114 = sadd.s32 %s113, 1
      %p117 = scmp.eq.s32.totalorder %s25, 3
      %p118 = scmp.ne.s32.totalorder %s113, %s115
      %p119 = scmp.eq.s32.totalorder %s25, 0
      %p120 = por %p118, %p119
      %p121 = scmp.ne.s32.totalorder %s113, %s115
      %p122 = scmp.eq.s32.totalorder %s30, 3
      %p123 = por %p121, %p122
      %p124 = scmp.ne.s32.totalorder %s115, %s116
      %p125 = scmp.eq.s32.totalorder %s30, 0
      %p126 = por %p124, %p125
      %p127 = scmp.ne.s32.totalorder %s115, %s116
      %p128 = scmp.eq.s32.totalorder %s31, 3
      %p129 = por %p127, %p128
      %p131 = scmp.ne.s32.totalorder %s116, %s130
      %p132 = scmp.eq.s32.totalorder %s31, 0
      %p133 = por %p131, %p132
      %s135 = sadd.s32 %s134, 1
      %p138 = scmp.eq.s32.totalorder %s25, 3
      %p139 = scmp.ne.s32.totalorder %s134, %s136
      %p140 = scmp.eq.s32.totalorder %s25, 0
      %p141 = por %p139, %p140
      %p142 = scmp.ne.s32.totalorder %s134, %s136
      %p143 = scmp.eq.s32.totalorder %s30, 3
      %p144 = por %p142, %p143
      %p145 = scmp.ne.s32.totalorder %s136, %s137
      %p146 = scmp.eq.s32.totalorder %s30, 0
      %p147 = por %p145, %p146
      %p148 = scmp.ne.s32.totalorder %s136, %s137
      %p149 = scmp.eq.s32.totalorder %s31, 3
      %p150 = por %p148, %p149
      %p152 = scmp.ne.s32.totalorder %s137, %s151
      %p153 = scmp.eq.s32.totalorder %s31, 0
      %p154 = por %p152, %p153
      %s156 = sadd.s32 %s155, 1
      %p159 = scmp.eq.s32.totalorder %s25, 3
      %p160 = scmp.ne.s32.totalorder %s155, %s157
      %p161 = scmp.eq.s32.totalorder %s25, 0
      %p162 = por %p160, %p161
      %p163 = scmp.ne.s32.totalorder %s155, %s157
      %p164 = scmp.eq.s32.totalorder %s30, 3
      %p165 = por %p163, %p164
      %p166 = scmp.ne.s32.totalorder %s157, %s158
      %p167 = scmp.eq.s32.totalorder %s30, 0
      %p168 = por %p166, %p167
      %p169 = scmp.ne.s32.totalorder %s157, %s158
      %p170 = scmp.eq.s32.totalorder %s31, 3
      %p171 = por %p169, %p170
      %p173 = scmp.ne.s32.totalorder %s158, %s172
      %p174 = scmp.eq.s32.totalorder %s31, 0
      %p175 = por %p173, %p174
      %s176 = ssub.s32 %s32, %s44
      %s177 = ssub.s32 %s33, %s40
      %s178 = sor.u32 %s176, %s177
      %p179 = scmp.eq.s32.totalorder %s178, 0
      %s181 = sadd.s32 %s180, 1
      %s182 = scalar_select %p179, %s180, %s181
      %p185 = pneg %p179
      %p186 = scmp.eq.s32.totalorder %s25, 3
      %p187 = por %p185, %p186
      %p188 = scmp.ne.s32.totalorder %s180, %s183
      %p189 = scmp.eq.s32.totalorder %s25, 0
      %p190 = por %p188, %p189
      %p191 = scmp.ne.s32.totalorder %s180, %s183
      %p192 = scmp.eq.s32.totalorder %s30, 3
      %p193 = por %p191, %p192
      %p194 = scmp.ne.s32.totalorder %s183, %s184
      %p195 = scmp.eq.s32.totalorder %s30, 0
      %p196 = por %p194, %p195
      %p197 = scmp.ne.s32.totalorder %s183, %s184
      %p198 = scmp.eq.s32.totalorder %s31, 3
      %p199 = por %p197, %p198
      %p201 = scmp.ne.s32.totalorder %s184, %s200
      %p202 = scmp.eq.s32.totalorder %s31, 0
      %p203 = por %p201, %p202
      %s204 = ssub.s32 %s32, %s44
      %s205 = ssub.s32 %s33, %s40
      %s206 = sor.u32 %s204, %s205
      %p207 = scmp.eq.s32.totalorder %s206, 0
      %s209 = sadd.s32 %s208, 1
      %s210 = scalar_select %p207, %s208, %s209
      %p213 = pneg %p207
      %p214 = scmp.eq.s32.totalorder %s25, 3
      %p215 = por %p213, %p214
      %p216 = scmp.ne.s32.totalorder %s208, %s211
      %p217 = scmp.eq.s32.totalorder %s25, 0
      %p218 = por %p216, %p217
      %p219 = scmp.ne.s32.totalorder %s208, %s211
      %p220 = scmp.eq.s32.totalorder %s30, 3
      %p221 = por %p219, %p220
      %p222 = scmp.ne.s32.totalorder %s211, %s212
      %p223 = scmp.eq.s32.totalorder %s30, 0
      %p224 = por %p222, %p223
      %p225 = scmp.ne.s32.totalorder %s211, %s212
      %p226 = scmp.eq.s32.totalorder %s31, 3
      %p227 = por %p225, %p226
      %p229 = scmp.ne.s32.totalorder %s212, %s228
      %p230 = scmp.eq.s32.totalorder %s31, 0
      %p231 = por %p229, %p230
      %p232 = scmp.le.s32.totalorder 1, %s25
      %p233 = scmp.lt.s32.totalorder %s25, 5
      %p234 = pnand %p232, %p233
      %p235 = pneg %p234
      // Predicated region
      $region9: #{tpu_custom_call.1} parent=5 // pred_check
        _
      $region10: #{tpu_custom_call.1} parent=5 // pred_check_branch
        %237 = sbr.rel (%p234) target = $region12
      $region11: #{tpu_custom_call.1} parent=5 // pred_region
        %s238 = ssub.s32 %s25, 1
        // Predicated region
        $region13: #{tpu_custom_call.1} parent=11 // pred_check
          %p239 = pneg %p84
        $region14: #{tpu_custom_call.1} parent=11 // pred_check_branch
          %241 = sbr.rel (%p239) target = $region16
        $region15: #{tpu_custom_call.1} parent=11 // pred_region
          _
        $region16: #{tpu_custom_call.1} parent=11 // pred_fallthru
          _
        // Predicated region
        $region17: #{tpu_custom_call.1} parent=11 // pred_check
          %p242 = pneg %p105
        $region18: #{tpu_custom_call.1} parent=11 // pred_check_branch
          %244 = sbr.rel (%p242) target = $region20
        $region19: #{tpu_custom_call.1} parent=11 // pred_region
          _
        $region20: #{tpu_custom_call.1} parent=11 // pred_fallthru
          _
        // Predicated region
        $region21: #{tpu_custom_call.1} parent=11 // pred_check
          %p245 = pneg %p126
        $region22: #{tpu_custom_call.1} parent=11 // pred_check_branch
          %247 = sbr.rel (%p245) target = $region24
        $region23: #{tpu_custom_call.1} parent=11 // pred_region
          %s249 = ssub.s32 256, 256
          %250 = vsyncadd [#allocation9], %s249
          %s251 = sshll.u32 [#allocation8], 4
          %s252 = int_to_ptr.vmem [resolvable:$true] %s251
          %257 = dma.hbm_to_vmem [thread:$0]  %s3, 256, %s252, [#allocation9], 128, 128, 8
        $region24: #{tpu_custom_call.1} parent=11 // pred_fallthru
          _
        // Predicated region
        $region25: #{tpu_custom_call.1} parent=11 // pred_check
          %p258 = pneg %p147
        $region26: #{tpu_custom_call.1} parent=11 // pred_check_branch
          %260 = sbr.rel (%p258) target = $region28
        $region27: #{tpu_custom_call.1} parent=11 // pred_region
          _
        $region28: #{tpu_custom_call.1} parent=11 // pred_fallthru
          _
        // Predicated region
        $region29: #{tpu_custom_call.1} parent=11 // pred_check
          %p261 = pneg %p168
        $region30: #{tpu_custom_call.1} parent=11 // pred_check_branch
          %263 = sbr.rel (%p261) target = $region32
        $region31: #{tpu_custom_call.1} parent=11 // pred_region
          _
        $region32: #{tpu_custom_call.1} parent=11 // pred_fallthru
          _
      $region12: #{tpu_custom_call.1} parent=5 // pred_fallthru
        _
      %p264 = scmp.lt.s32.totalorder %s25, 4
      // Predicated region
      $region33: #{tpu_custom_call.1} parent=5 // pred_check
        %p265 = pneg %p264
      $region34: #{tpu_custom_call.1} parent=5 // pred_check_branch
        %267 = sbr.rel (%p265) target = $region36
      $region35: #{tpu_custom_call.1} parent=5 // pred_region
        // Predicated region
        $region37: #{tpu_custom_call.1} parent=35 // pred_check
          %p268 = pneg %p57
        $region38: #{tpu_custom_call.1} parent=35 // pred_check_branch
          %270 = sbr.rel (%p268) target = $region40
        $region39: #{tpu_custom_call.1} parent=35 // pred_region
          %s271 = sand.u32 %s47, 1
          %s272 = scalar_lea.sflag [#allocation6], %s271
          %s273 = sand.u32 %s47, 1
          %s274 = smul.addr %s273, 32
          %s275 = scalar_lea.vmem [#allocation5], %s274
          %s277 = ssub.s32 512, 512
          %278 = vsyncadd %s272, %s277
          %s279 = smul.addr %s32, 4
          %s280 = smul.addr %s279, 128
          %s281 = scalar_lea.hbm %s0, %s280
          %s282 = sshll.u32 %s275, 4
          %s283 = int_to_ptr.vmem [resolvable:$true] %s282
          %288 = dma.hbm_to_vmem [thread:$0]  %s281, 512, %s283, %s272, 256, 256, 16
        $region40: #{tpu_custom_call.1} parent=35 // pred_fallthru
          _
      $region36: #{tpu_custom_call.1} parent=5 // pred_fallthru
        _
      %p289 = scmp.le.s32.totalorder 1, %s25
      %p290 = scmp.lt.s32.totalorder %s25, 5
      %p291 = pnand %p289, %p290
      %p292 = pneg %p291
      // Predicated region
      $region41: #{tpu_custom_call.1} parent=5 // pred_check
        _
      $region42: #{tpu_custom_call.1} parent=5 // pred_check_branch
        %294 = sbr.rel (%p291) target = $region44
      $region43: #{tpu_custom_call.1} parent=5 // pred_region
        %s295 = ssub.s32 %s25, 1
        %s296 = sand.u32 %s50, 1
        %s297 = scalar_lea.sflag [#allocation6], %s296
        %s298 = sand.u32 %s50, 1
        %s299 = smul.addr %s298, 32
        %s300 = scalar_lea.vmem [#allocation5], %s299
        // Predicated region
        $region45: #{tpu_custom_call.1} parent=43 // pred_check
          %p301 = pneg %p63
        $region46: #{tpu_custom_call.1} parent=43 // pred_check_branch
          %303 = sbr.rel (%p301) target = $region48
        $region47: #{tpu_custom_call.1} parent=43 // pred_region
          %304 = dma.done %s297, 512
        $region48: #{tpu_custom_call.1} parent=43 // pred_fallthru
          _
        // Predicated region
        $region49: #{tpu_custom_call.1} parent=43 // pred_check
          %p305 = pneg %p126
        $region50: #{tpu_custom_call.1} parent=43 // pred_check_branch
          %307 = sbr.rel (%p305) target = $region52
        $region51: #{tpu_custom_call.1} parent=43 // pred_region
          %308 = dma.done [#allocation9], 256
        $region52: #{tpu_custom_call.1} parent=43 // pred_fallthru
          _
        %s309 = sand.u32 %s50, 1
        %s310 = scalar_lea.sflag [#allocation6], %s309
        %s311 = sand.u32 %s50, 1
        %s312 = smul.addr %s311, 32
        %s313 = scalar_lea.vmem [#allocation5], %s312
        %p314 = pneg %p63
        %p315 = pneg %p60
        %p316 = pneg %p84
        %p317 = pneg %p81
        %p318 = pneg %p105
        %p319 = pneg %p102
        %p320 = pneg %p126
        %p321 = pneg %p123
        %p322 = pneg %p147
        %p323 = pneg %p144
        %p324 = pneg %p168
        %p325 = pneg %p165
        %p326 = pneg %p196
        %p327 = pneg %p193
        %s328 = sand.u32 %s183, 1
        %s329 = scalar_lea.sflag [#allocation7], %s328
        %s330 = sand.u32 %s183, 1
        %s331 = smul.addr %s330, 16
        %s332 = scalar_lea.vmem [#allocation10], %s331
        %p333 = pneg %p224
        %p334 = pneg %p221
        %s335 = sand.u32 %s211, 1
        %s336 = scalar_lea.sflag [#allocation12], %s335
        %s337 = sand.u32 %s211, 1
        %s338 = smul.addr %s337, 256
        %s339 = scalar_lea.vmem [#allocation11], %s338
        %s340 = smul.u32 16, %s35
        %v341 = vld [vmem:[%s300] sm:$0xff]
        %v342 = vld [vmem:[%s300 + $0x8] sm:$0xff]
        %v343 = vld [vmem:[%s300 + $0x10] sm:$0xff]
        %v344 = vld [vmem:[%s300 + $0x18] sm:$0xff]
        %p345 = scmp.eq.s32.totalorder %s35, 0
        // Predicated region
        $region53: #{tpu_custom_call.1} parent=43 // pred_check
          %p346 = pneg %p345
        $region54: #{tpu_custom_call.1} parent=43 // pred_check_branch
          %348 = sbr.rel (%p346) target = $region56
        $region55: #{tpu_custom_call.1} parent=43 // pred_region
          %v349 = vld [vmem:[#allocation8] sm:$0xff]
          %v350 = vld [vmem:[#allocation8 + $0x8] sm:$0xff]
          %v351 = vld [vmem:[%s4] sm:$0xff]
          %v352 = vld [vmem:[%s4 + $0x8] sm:$0xff]
          %354 = vset.pattern.permute.xlu0 0
          %355 = vperm.xlu0 %354, %v351
          %v356 = vpop.permute.xlu0 %355
          %359 = vset.pattern.permute.xlu0 0
          %360 = vperm.xlu0 %359, %v352
          %v361 = vpop.permute.xlu0 %360
          %363 = vxpose.xlu0.b32.start [1/16] %v349, 128
          %364 = vxpose.xlu0.b32.cont [2/16] %v350, 128
          %365 = vxpose.xlu0.b32.cont [3/16] 0.0, 128
          %366 = vxpose.xlu0.b32.cont [4/16] 0.0, 128
          %367 = vxpose.xlu0.b32.cont [5/16] 0.0, 128
          %368 = vxpose.xlu0.b32.cont [6/16] 0.0, 128
          %369 = vxpose.xlu0.b32.cont [7/16] 0.0, 128
          %370 = vxpose.xlu0.b32.cont [8/16] 0.0, 128
          %371 = vxpose.xlu0.b32.cont [9/16] 0.0, 128
          %372 = vxpose.xlu0.b32.cont [10/16] 0.0, 128
          %373 = vxpose.xlu0.b32.cont [11/16] 0.0, 128
          %374 = vxpose.xlu0.b32.cont [12/16] 0.0, 128
          %375 = vxpose.xlu0.b32.cont [13/16] 0.0, 128
          %376 = vxpose.xlu0.b32.cont [14/16] 0.0, 128
          %377 = vxpose.xlu0.b32.cont [15/16] 0.0, 128
          %378 = vxpose.xlu0.b32.end [16/16] 0.0, 128
          %v379 = vpop.trf.xlu0
          %v380 = vpop.trf.xlu0
          %v381 = vpop.trf.xlu0
          %v382 = vpop.trf.xlu0
          %v383 = vpop.trf.xlu0
          %v384 = vpop.trf.xlu0
          %v385 = vpop.trf.xlu0
          %v386 = vpop.trf.xlu0
          %v387 = vpop.trf.xlu0
          %v388 = vpop.trf.xlu0
          %v389 = vpop.trf.xlu0
          %v390 = vpop.trf.xlu0
          %v391 = vpop.trf.xlu0
          %v392 = vpop.trf.xlu0
          %v393 = vpop.trf.xlu0
          %v394 = vpop.trf.xlu0
          %vm395 = vcmask 130048
          %v397 = vsel %vm395, %v379, 0
          %v400 = vsel %vm395, %v380, 0
          %402 = vmatprep.subr.mxu0 0.0
          %403 = vmatpush1.msra.mxu0 0.0
          %404 = vmatprep.subr.mxu0 0.0
          %405 = vmatpush1.msra.mxu0 0.0
          %406 = vmatprep.subr.mxu0 0.0
          %407 = vmatpush1.msra.mxu0 0.0
          %408 = vmatprep.subr.mxu0 0.0
          %409 = vmatpush1.msra.mxu0 0.0
          %410 = vmatprep.subr.mxu0 0.0
          %411 = vmatpush1.msra.mxu0 0.0
          %412 = vmatprep.subr.mxu0 0.0
          %413 = vmatpush1.msra.mxu0 0.0
          %414 = vmatprep.subr.mxu0 0.0
          %415 = vmatpush1.msra.mxu0 0.0
          %416 = vmatprep.subr.mxu0 0.0
          %417 = vmatpush1.msra.mxu0 0.0
          %418 = vmatprep.subr.mxu0 0.0
          %419 = vmatpush1.msra.mxu0 0.0
          %420 = vmatprep.subr.mxu0 0.0
          %421 = vmatpush1.msra.mxu0 0.0
          %422 = vmatprep.subr.mxu0 0.0
          %423 = vmatpush1.msra.mxu0 0.0
          %424 = vmatprep.subr.mxu0 0.0
          %425 = vmatpush1.msra.mxu0 0.0
          %426 = vmatprep.subr.mxu0 0.0
          %427 = vmatpush1.msra.mxu0 0.0
          %428 = vmatprep.subr.mxu0 0.0
          %429 = vmatpush1.msra.mxu0 0.0
          %430 = vmatprep.subr.mxu0 %v344
          %431 = vmatpush1.msra.mxu0 %v343
          %432 = vmatprep.subr.mxu0 %v342
          %433 = vmatpush1.msra.mxu0 %v341
          %434 = vmatprep.subr.mxu0 0.0
          %435 = vmatpush2.msra.mxu0 0.0
          %436 = vmatprep.subr.mxu0 0.0
          %437 = vmatpush2.msra.mxu0 0.0
          %438 = vmatprep.subr.mxu0 0.0
          %439 = vmatpush2.msra.mxu0 0.0
          %440 = vmatprep.subr.mxu0 0.0
          %441 = vmatpush2.msra.mxu0 0.0
          %442 = vmatprep.subr.mxu0 0.0
          %443 = vmatpush2.msra.mxu0 0.0
          %444 = vmatprep.subr.mxu0 0.0
          %445 = vmatpush2.msra.mxu0 0.0
          %446 = vmatprep.subr.mxu0 0.0
          %447 = vmatpush2.msra.mxu0 0.0
          %448 = vmatprep.subr.mxu0 0.0
          %449 = vmatpush2.msra.mxu0 0.0
          %450 = vmatprep.subr.mxu0 0.0
          %451 = vmatpush2.msra.mxu0 0.0
          %452 = vmatprep.subr.mxu0 0.0
          %453 = vmatpush2.msra.mxu0 0.0
          %454 = vmatprep.subr.mxu0 0.0
          %455 = vmatpush2.msra.mxu0 0.0
          %456 = vmatprep.subr.mxu0 0.0
          %457 = vmatpush2.msra.mxu0 0.0
          %458 = vmatprep.subr.mxu0 0.0
          %459 = vmatpush2.msra.mxu0 0.0
          %460 = vmatprep.subr.mxu0 0.0
          %461 = vmatpush2.msra.mxu0 0.0
          %462 = vmatprep.subr.mxu0 0.0
          %463 = vmatpush2.msra.mxu0 0.0
          %464 = vmatprep.subr.mxu0 0.0
          %465 = vmatpush2.msra.mxu0 0.0
          %466 = vmatprep.mubr.f32.mxu0 0.0
          %467 = vmatmul.mubr.f32.gmra.mxu0 %v397
          %v468 = vpop.f32.mrf.mxu0
          %v469 = vadd.f32 %v356, %v468
          %v470 = vpop.f32.mrf.mxu0
          %v471 = vadd.f32 %v356, %v470
          %472 = vmatprep.mubr.f32.mxu0 0.0
          %473 = vmatmul.mubr.f32.gmra.mxu0 %v400
          %v474 = vpop.f32.mrf.mxu0
          %v475 = vadd.f32 %v361, %v474
          %v476 = vpop.f32.mrf.mxu0
          %v477 = vadd.f32 %v361, %v476
          %478 = vdwg.mxu0
          %479 = vst [vmem:[#allocation2] sm:$0xff] %v469
          %480 = vst [vmem:[#allocation2 + $0x8] sm:$0xff] %v471
          %481 = vst [vmem:[#allocation2 + $0x10] sm:$0xff] %v475
          %482 = vst [vmem:[#allocation2 + $0x18] sm:$0xff] %v477
          %v483 = vld [vmem:[%s2] sm:$0x1]
          %v485 = vsel %vm395, %v483, 0
          %487 = vmatprep.subr.mxu0 0.0
          %488 = vmatpush1.msra.mxu0 0.0
          %489 = vmatprep.subr.mxu0 0.0
          %490 = vmatpush1.msra.mxu0 0.0
          %491 = vmatprep.subr.mxu0 0.0
          %492 = vmatpush1.msra.mxu0 0.0
          %493 = vmatprep.subr.mxu0 0.0
          %494 = vmatpush1.msra.mxu0 0.0
          %495 = vmatprep.subr.mxu0 0.0
          %496 = vmatpush1.msra.mxu0 0.0
          %497 = vmatprep.subr.mxu0 0.0
          %498 = vmatpush1.msra.mxu0 0.0
          %499 = vmatprep.subr.mxu0 0.0
          %500 = vmatpush1.msra.mxu0 0.0
          %501 = vmatprep.subr.mxu0 0.0
          %502 = vmatpush1.msra.mxu0 0.0
          %503 = vmatprep.subr.mxu0 0.0
          %504 = vmatpush1.msra.mxu0 0.0
          %505 = vmatprep.subr.mxu0 0.0
          %506 = vmatpush1.msra.mxu0 0.0
          %507 = vmatprep.subr.mxu0 0.0
          %508 = vmatpush1.msra.mxu0 0.0
          %509 = vmatprep.subr.mxu0 0.0
          %510 = vmatpush1.msra.mxu0 0.0
          %511 = vmatprep.subr.mxu0 0.0
          %512 = vmatpush1.msra.mxu0 0.0
          %513 = vmatprep.subr.mxu0 0.0
          %514 = vmatpush1.msra.mxu0 0.0
          %515 = vmatprep.subr.mxu0 %v344
          %516 = vmatpush1.msra.mxu0 %v343
          %517 = vmatprep.subr.mxu0 %v342
          %518 = vmatpush1.msra.mxu0 %v341
          %519 = vmatprep.subr.mxu0 0.0
          %520 = vmatpush2.msra.mxu0 0.0
          %521 = vmatprep.subr.mxu0 0.0
          %522 = vmatpush2.msra.mxu0 0.0
          %523 = vmatprep.subr.mxu0 0.0
          %524 = vmatpush2.msra.mxu0 0.0
          %525 = vmatprep.subr.mxu0 0.0
          %526 = vmatpush2.msra.mxu0 0.0
          %527 = vmatprep.subr.mxu0 0.0
          %528 = vmatpush2.msra.mxu0 0.0
          %529 = vmatprep.subr.mxu0 0.0
          %530 = vmatpush2.msra.mxu0 0.0
          %531 = vmatprep.subr.mxu0 0.0
          %532 = vmatpush2.msra.mxu0 0.0
          %533 = vmatprep.subr.mxu0 0.0
          %534 = vmatpush2.msra.mxu0 0.0
          %535 = vmatprep.subr.mxu0 0.0
          %536 = vmatpush2.msra.mxu0 0.0
          %537 = vmatprep.subr.mxu0 0.0
          %538 = vmatpush2.msra.mxu0 0.0
          %539 = vmatprep.subr.mxu0 0.0
          %540 = vmatpush2.msra.mxu0 0.0
          %541 = vmatprep.subr.mxu0 0.0
          %542 = vmatpush2.msra.mxu0 0.0
          %543 = vmatprep.subr.mxu0 0.0
          %544 = vmatpush2.msra.mxu0 0.0
          %545 = vmatprep.subr.mxu0 0.0
          %546 = vmatpush2.msra.mxu0 0.0
          %547 = vmatprep.subr.mxu0 0.0
          %548 = vmatpush2.msra.mxu0 0.0
          %549 = vmatprep.subr.mxu0 0.0
          %550 = vmatpush2.msra.mxu0 0.0
          %551 = vmatprep.mubr.f32.mxu0 0.0
          %552 = vmatmul.mubr.f32.gmra.mxu0 %v485
          %v553 = vpop.f32.mrf.mxu0
          %v554 = vadd.f32 0.0, %v553
          %v555 = vpop.f32.mrf.mxu0
          %v556 = vadd.f32 0.0, %v555
          %557 = vdwg.mxu0
          %v560 = vcombine.low %v554, %v556
          %v562 = vunpack.c.l.s4 1966171168
          %v563 = vunpack.c.0.s8 %v562
          %v564 = vlaneseq
          %v565 = vshrl.u32 %v564, 7
          %v566 = vsub.s32 %v563, %v565
          %v567 = vrot.slane %v560, %v566
          %v569 = vunpack.c.l.s4 1966171168
          %v570 = vunpack.c.0.s8 %v569
          %v571 = vlaneseq
          %v572 = vshrl.u32 %v571, 7
          %v573 = vsub.s32 %v570, %v572
          %v574 = vrot.slane %v567, %v573
          %v576 = vlaneseq
          %vm577 = vcmp.ge.s32.totalorder %v576, 0
          %vm578 = vcmp.lt.s32.totalorder %v576, 256
          %vm579 = vmand %vm577, %vm578
          %580 = vst.msk [vmem:[#allocation3] sm:$0x3] %vm579, %v574
        $region56: #{tpu_custom_call.1} parent=43 // pred_fallthru
          _
        %s581 = smul.u32 %s35, 128
        %s582 = sshra.s32 %s581, 7
        %s583 = sand.u32 %s581, 127
        %s584 = smul.addr %s582, 8
        %s585 = scalar_lea.vmem %s300, %s584 [#allocation5]
        %v586 = vld [vmem:[%s585] sm:$0xff]
        %v587 = vld [vmem:[%s585 + $0x10] sm:$0xff]
        %v588 = vld [vmem:[%s1] sm:$0xff]
        %v589 = vld [vmem:[%s1 + $0x8] sm:$0xff]
        %590 = vxpose.xlu0.b32.start [1/16] %v586, 128
        %591 = vxpose.xlu0.b32.cont [2/16] %v587, 128
        %592 = vxpose.xlu0.b32.cont [3/16] 0.0, 128
        %593 = vxpose.xlu0.b32.cont [4/16] 0.0, 128
        %594 = vxpose.xlu0.b32.cont [5/16] 0.0, 128
        %595 = vxpose.xlu0.b32.cont [6/16] 0.0, 128
        %596 = vxpose.xlu0.b32.cont [7/16] 0.0, 128
        %597 = vxpose.xlu0.b32.cont [8/16] 0.0, 128
        %598 = vxpose.xlu0.b32.cont [9/16] 0.0, 128
        %599 = vxpose.xlu0.b32.cont [10/16] 0.0, 128
        %600 = vxpose.xlu0.b32.cont [11/16] 0.0, 128
        %601 = vxpose.xlu0.b32.cont [12/16] 0.0, 128
        %602 = vxpose.xlu0.b32.cont [13/16] 0.0, 128
        %603 = vxpose.xlu0.b32.cont [14/16] 0.0, 128
        %604 = vxpose.xlu0.b32.cont [15/16] 0.0, 128
        %605 = vxpose.xlu0.b32.end [16/16] 0.0, 128
        %v606 = vpop.trf.xlu0
        %v607 = vpop.trf.xlu0
        %v608 = vpop.trf.xlu0
        %v609 = vpop.trf.xlu0
        %v610 = vpop.trf.xlu0
        %v611 = vpop.trf.xlu0
        %v612 = vpop.trf.xlu0
        %v613 = vpop.trf.xlu0
        %v614 = vpop.trf.xlu0
        %v615 = vpop.trf.xlu0
        %v616 = vpop.trf.xlu0
        %v617 = vpop.trf.xlu0
        %v618 = vpop.trf.xlu0
        %v619 = vpop.trf.xlu0
        %v620 = vpop.trf.xlu0
        %v621 = vpop.trf.xlu0
        %vm622 = vcmask 130048
        %v624 = vsel %vm622, %v606, 0
        %v627 = vsel %vm622, %v607, 0
        %v630 = vsel %vm622, %v608, 0
        %v633 = vsel %vm622, %v609, 0
        %v636 = vsel %vm622, %v610, 0
        %v639 = vsel %vm622, %v611, 0
        %v642 = vsel %vm622, %v612, 0
        %v645 = vsel %vm622, %v613, 0
        %v648 = vsel %vm622, %v614, 0
        %v651 = vsel %vm622, %v615, 0
        %v654 = vsel %vm622, %v616, 0
        %v657 = vsel %vm622, %v617, 0
        %v660 = vsel %vm622, %v618, 0
        %v663 = vsel %vm622, %v619, 0
        %v666 = vsel %vm622, %v620, 0
        %v669 = vsel %vm622, %v621, 0
        %671 = vmatprep.subr.mxu0 0.0
        %672 = vmatpush1.msra.mxu0 0.0
        %673 = vmatprep.subr.mxu0 0.0
        %674 = vmatpush1.msra.mxu0 0.0
        %675 = vmatprep.subr.mxu0 0.0
        %676 = vmatpush1.msra.mxu0 0.0
        %677 = vmatprep.subr.mxu0 0.0
        %678 = vmatpush1.msra.mxu0 0.0
        %679 = vmatprep.subr.mxu0 0.0
        %680 = vmatpush1.msra.mxu0 0.0
        %681 = vmatprep.subr.mxu0 0.0
        %682 = vmatpush1.msra.mxu0 0.0
        %683 = vmatprep.subr.mxu0 0.0
        %684 = vmatpush1.msra.mxu0 0.0
        %685 = vmatprep.subr.mxu0 0.0
        %686 = vmatpush1.msra.mxu0 0.0
        %687 = vmatprep.subr.mxu0 0.0
        %688 = vmatpush1.msra.mxu0 0.0
        %689 = vmatprep.subr.mxu0 0.0
        %690 = vmatpush1.msra.mxu0 0.0
        %691 = vmatprep.subr.mxu0 0.0
        %692 = vmatpush1.msra.mxu0 0.0
        %693 = vmatprep.subr.mxu0 0.0
        %694 = vmatpush1.msra.mxu0 0.0
        %695 = vmatprep.subr.mxu0 0.0
        %696 = vmatpush1.msra.mxu0 0.0
        %697 = vmatprep.subr.mxu0 0.0
        %698 = vmatpush1.msra.mxu0 0.0
        %699 = vmatprep.subr.mxu0 0.0
        %700 = vmatpush1.msra.mxu0 %v589
        %701 = vmatprep.subr.mxu0 0.0
        %702 = vmatpush1.msra.mxu0 %v588
        %703 = vmatprep.subr.mxu0 0.0
        %704 = vmatpush2.msra.mxu0 0.0
        %705 = vmatprep.subr.mxu0 0.0
        %706 = vmatpush2.msra.mxu0 0.0
        %707 = vmatprep.subr.mxu0 0.0
        %708 = vmatpush2.msra.mxu0 0.0
        %709 = vmatprep.subr.mxu0 0.0
        %710 = vmatpush2.msra.mxu0 0.0
        %711 = vmatprep.subr.mxu0 0.0
        %712 = vmatpush2.msra.mxu0 0.0
        %713 = vmatprep.subr.mxu0 0.0
        %714 = vmatpush2.msra.mxu0 0.0
        %715 = vmatprep.subr.mxu0 0.0
        %716 = vmatpush2.msra.mxu0 0.0
        %717 = vmatprep.subr.mxu0 0.0
        %718 = vmatpush2.msra.mxu0 0.0
        %719 = vmatprep.subr.mxu0 0.0
        %720 = vmatpush2.msra.mxu0 0.0
        %721 = vmatprep.subr.mxu0 0.0
        %722 = vmatpush2.msra.mxu0 0.0
        %723 = vmatprep.subr.mxu0 0.0
        %724 = vmatpush2.msra.mxu0 0.0
        %725 = vmatprep.subr.mxu0 0.0
        %726 = vmatpush2.msra.mxu0 0.0
        %727 = vmatprep.subr.mxu0 0.0
        %728 = vmatpush2.msra.mxu0 0.0
        %729 = vmatprep.subr.mxu0 0.0
        %730 = vmatpush2.msra.mxu0 0.0
        %731 = vmatprep.subr.mxu0 0.0
        %732 = vmatpush2.msra.mxu0 0.0
        %733 = vmatprep.subr.mxu0 0.0
        %734 = vmatpush2.msra.mxu0 0.0
        %735 = vmatprep.mubr.f32.mxu0 0.0
        %736 = vmatmul.mubr.f32.gmra.mxu0 %v624
        %v737 = vpop.f32.mrf.mxu0
        %v738 = vadd.f32 0.0, %v737
        %v739 = vpop.f32.mrf.mxu0
        %740 = vmatprep.mubr.f32.mxu0 0.0
        %741 = vmatmul.mubr.f32.gmra.mxu0 %v627
        %v742 = vpop.f32.mrf.mxu0
        %v743 = vadd.f32 0.0, %v742
        %v744 = vpop.f32.mrf.mxu0
        %745 = vmatprep.mubr.f32.mxu0 0.0
        %746 = vmatmul.mubr.f32.gmra.mxu0 %v630
        %v747 = vpop.f32.mrf.mxu0
        %v748 = vadd.f32 0.0, %v747
        %v749 = vpop.f32.mrf.mxu0
        %750 = vmatprep.mubr.f32.mxu0 0.0
        %751 = vmatmul.mubr.f32.gmra.mxu0 %v633
        %v752 = vpop.f32.mrf.mxu0
        %v753 = vadd.f32 0.0, %v752
        %v754 = vpop.f32.mrf.mxu0
        %755 = vmatprep.mubr.f32.mxu0 0.0
        %756 = vmatmul.mubr.f32.gmra.mxu0 %v636
        %v757 = vpop.f32.mrf.mxu0
        %v758 = vadd.f32 0.0, %v757
        %v759 = vpop.f32.mrf.mxu0
        %760 = vmatprep.mubr.f32.mxu0 0.0
        %761 = vmatmul.mubr.f32.gmra.mxu0 %v639
        %v762 = vpop.f32.mrf.mxu0
        %v763 = vadd.f32 0.0, %v762
        %v764 = vpop.f32.mrf.mxu0
        %765 = vmatprep.mubr.f32.mxu0 0.0
        %766 = vmatmul.mubr.f32.gmra.mxu0 %v642
        %v767 = vpop.f32.mrf.mxu0
        %v768 = vadd.f32 0.0, %v767
        %v769 = vpop.f32.mrf.mxu0
        %770 = vmatprep.mubr.f32.mxu0 0.0
        %771 = vmatmul.mubr.f32.gmra.mxu0 %v645
        %v772 = vpop.f32.mrf.mxu0
        %v773 = vadd.f32 0.0, %v772
        %v774 = vpop.f32.mrf.mxu0
        %775 = vmatprep.mubr.f32.mxu0 0.0
        %776 = vmatmul.mubr.f32.gmra.mxu0 %v648
        %v777 = vpop.f32.mrf.mxu0
        %v778 = vadd.f32 0.0, %v777
        %v779 = vpop.f32.mrf.mxu0
        %780 = vmatprep.mubr.f32.mxu0 0.0
        %781 = vmatmul.mubr.f32.gmra.mxu0 %v651
        %v782 = vpop.f32.mrf.mxu0
        %v783 = vadd.f32 0.0, %v782
        %v784 = vpop.f32.mrf.mxu0
        %785 = vmatprep.mubr.f32.mxu0 0.0
        %786 = vmatmul.mubr.f32.gmra.mxu0 %v654
        %v787 = vpop.f32.mrf.mxu0
        %v788 = vadd.f32 0.0, %v787
        %v789 = vpop.f32.mrf.mxu0
        %790 = vmatprep.mubr.f32.mxu0 0.0
        %791 = vmatmul.mubr.f32.gmra.mxu0 %v657
        %v792 = vpop.f32.mrf.mxu0
        %v793 = vadd.f32 0.0, %v792
        %v794 = vpop.f32.mrf.mxu0
        %795 = vmatprep.mubr.f32.mxu0 0.0
        %796 = vmatmul.mubr.f32.gmra.mxu0 %v660
        %v797 = vpop.f32.mrf.mxu0
        %v798 = vadd.f32 0.0, %v797
        %v799 = vpop.f32.mrf.mxu0
        %800 = vmatprep.mubr.f32.mxu0 0.0
        %801 = vmatmul.mubr.f32.gmra.mxu0 %v663
        %v802 = vpop.f32.mrf.mxu0
        %v803 = vadd.f32 0.0, %v802
        %v804 = vpop.f32.mrf.mxu0
        %805 = vmatprep.mubr.f32.mxu0 0.0
        %806 = vmatmul.mubr.f32.gmra.mxu0 %v666
        %v807 = vpop.f32.mrf.mxu0
        %v808 = vadd.f32 0.0, %v807
        %v809 = vpop.f32.mrf.mxu0
        %810 = vmatprep.mubr.f32.mxu0 0.0
        %811 = vmatmul.mubr.f32.gmra.mxu0 %v669
        %v812 = vpop.f32.mrf.mxu0
        %v813 = vadd.f32 0.0, %v812
        %v814 = vpop.f32.mrf.mxu0
        %815 = vdwg.mxu0
        %v816 = vld [vmem:[#allocation3] sm:$0x3]
        %v818 = vlaneseq
        %v819 = vshrl.u32 %v818, 7
        %v820 = vsub.s32 0, %v819
        %v821 = vrot.slane %v816, %v820
        %v822 = vlaneseq
        %v823 = vshrl.u32 %v822, 7
        %v824 = vsub.s32 1, %v823
        %v825 = vrot.slane %v816, %v824
        %v829 = vsel %vm622, %v738, 0
        %v832 = vsel %vm622, %v743, 0
        %v835 = vsel %vm622, %v748, 0
        %v838 = vsel %vm622, %v753, 0
        %v841 = vsel %vm622, %v758, 0
        %v844 = vsel %vm622, %v763, 0
        %v847 = vsel %vm622, %v768, 0
        %v850 = vsel %vm622, %v773, 0
        %v853 = vsel %vm622, %v778, 0
        %v856 = vsel %vm622, %v783, 0
        %v859 = vsel %vm622, %v788, 0
        %v862 = vsel %vm622, %v793, 0
        %v865 = vsel %vm622, %v798, 0
        %v868 = vsel %vm622, %v803, 0
        %v871 = vsel %vm622, %v808, 0
        %v874 = vsel %vm622, %v813, 0
        %876 = vmatprep.subr.mxu0 0.0
        %877 = vmatpush1.msra.mxu0 0.0
        %878 = vmatprep.subr.mxu0 0.0
        %879 = vmatpush1.msra.mxu0 0.0
        %880 = vmatprep.subr.mxu0 0.0
        %881 = vmatpush1.msra.mxu0 0.0
        %882 = vmatprep.subr.mxu0 0.0
        %883 = vmatpush1.msra.mxu0 0.0
        %884 = vmatprep.subr.mxu0 0.0
        %885 = vmatpush1.msra.mxu0 0.0
        %886 = vmatprep.subr.mxu0 0.0
        %887 = vmatpush1.msra.mxu0 0.0
        %888 = vmatprep.subr.mxu0 0.0
        %889 = vmatpush1.msra.mxu0 0.0
        %890 = vmatprep.subr.mxu0 0.0
        %891 = vmatpush1.msra.mxu0 0.0
        %892 = vmatprep.subr.mxu0 0.0
        %893 = vmatpush1.msra.mxu0 0.0
        %894 = vmatprep.subr.mxu0 0.0
        %895 = vmatpush1.msra.mxu0 0.0
        %896 = vmatprep.subr.mxu0 0.0
        %897 = vmatpush1.msra.mxu0 0.0
        %898 = vmatprep.subr.mxu0 0.0
        %899 = vmatpush1.msra.mxu0 0.0
        %900 = vmatprep.subr.mxu0 0.0
        %901 = vmatpush1.msra.mxu0 0.0
        %902 = vmatprep.subr.mxu0 0.0
        %903 = vmatpush1.msra.mxu0 0.0
        %904 = vmatprep.subr.mxu0 %v344
        %905 = vmatpush1.msra.mxu0 %v343
        %906 = vmatprep.subr.mxu0 %v342
        %907 = vmatpush1.msra.mxu0 %v341
        %908 = vmatprep.subr.mxu0 0.0
        %909 = vmatpush2.msra.mxu0 0.0
        %910 = vmatprep.subr.mxu0 0.0
        %911 = vmatpush2.msra.mxu0 0.0
        %912 = vmatprep.subr.mxu0 0.0
        %913 = vmatpush2.msra.mxu0 0.0
        %914 = vmatprep.subr.mxu0 0.0
        %915 = vmatpush2.msra.mxu0 0.0
        %916 = vmatprep.subr.mxu0 0.0
        %917 = vmatpush2.msra.mxu0 0.0
        %918 = vmatprep.subr.mxu0 0.0
        %919 = vmatpush2.msra.mxu0 0.0
        %920 = vmatprep.subr.mxu0 0.0
        %921 = vmatpush2.msra.mxu0 0.0
        %922 = vmatprep.subr.mxu0 0.0
        %923 = vmatpush2.msra.mxu0 0.0
        %924 = vmatprep.subr.mxu0 0.0
        %925 = vmatpush2.msra.mxu0 0.0
        %926 = vmatprep.subr.mxu0 0.0
        %927 = vmatpush2.msra.mxu0 0.0
        %928 = vmatprep.subr.mxu0 0.0
        %929 = vmatpush2.msra.mxu0 0.0
        %930 = vmatprep.subr.mxu0 0.0
        %931 = vmatpush2.msra.mxu0 0.0
        %932 = vmatprep.subr.mxu0 0.0
        %933 = vmatpush2.msra.mxu0 0.0
        %934 = vmatprep.subr.mxu0 0.0
        %935 = vmatpush2.msra.mxu0 0.0
        %936 = vmatprep.subr.mxu0 0.0
        %937 = vmatpush2.msra.mxu0 0.0
        %938 = vmatprep.subr.mxu0 0.0
        %939 = vmatpush2.msra.mxu0 0.0
        %940 = vmatprep.mubr.f32.mxu0 0.0
        %941 = vmatmul.mubr.f32.gmra.mxu0 %v829
        %v942 = vpop.f32.mrf.mxu0
        %v943 = vadd.f32 %v821, %v942
        %v944 = vpop.f32.mrf.mxu0
        %v945 = vadd.f32 %v825, %v944
        %946 = vmatprep.mubr.f32.mxu0 0.0
        %947 = vmatmul.mubr.f32.gmra.mxu0 %v832
        %v948 = vpop.f32.mrf.mxu0
        %v949 = vadd.f32 %v821, %v948
        %v950 = vpop.f32.mrf.mxu0
        %v951 = vadd.f32 %v825, %v950
        %952 = vmatprep.mubr.f32.mxu0 0.0
        %953 = vmatmul.mubr.f32.gmra.mxu0 %v835
        %v954 = vpop.f32.mrf.mxu0
        %v955 = vadd.f32 %v821, %v954
        %v956 = vpop.f32.mrf.mxu0
        %v957 = vadd.f32 %v825, %v956
        %958 = vmatprep.mubr.f32.mxu0 0.0
        %959 = vmatmul.mubr.f32.gmra.mxu0 %v838
        %v960 = vpop.f32.mrf.mxu0
        %v961 = vadd.f32 %v821, %v960
        %v962 = vpop.f32.mrf.mxu0
        %v963 = vadd.f32 %v825, %v962
        %964 = vmatprep.mubr.f32.mxu0 0.0
        %965 = vmatmul.mubr.f32.gmra.mxu0 %v841
        %v966 = vpop.f32.mrf.mxu0
        %v967 = vadd.f32 %v821, %v966
        %v968 = vpop.f32.mrf.mxu0
        %v969 = vadd.f32 %v825, %v968
        %970 = vmatprep.mubr.f32.mxu0 0.0
        %971 = vmatmul.mubr.f32.gmra.mxu0 %v844
        %v972 = vpop.f32.mrf.mxu0
        %v973 = vadd.f32 %v821, %v972
        %v974 = vpop.f32.mrf.mxu0
        %v975 = vadd.f32 %v825, %v974
        %976 = vmatprep.mubr.f32.mxu0 0.0
        %977 = vmatmul.mubr.f32.gmra.mxu0 %v847
        %v978 = vpop.f32.mrf.mxu0
        %v979 = vadd.f32 %v821, %v978
        %v980 = vpop.f32.mrf.mxu0
        %v981 = vadd.f32 %v825, %v980
        %982 = vmatprep.mubr.f32.mxu0 0.0
        %983 = vmatmul.mubr.f32.gmra.mxu0 %v850
        %v984 = vpop.f32.mrf.mxu0
        %v985 = vadd.f32 %v821, %v984
        %v986 = vpop.f32.mrf.mxu0
        %v987 = vadd.f32 %v825, %v986
        %988 = vmatprep.mubr.f32.mxu0 0.0
        %989 = vmatmul.mubr.f32.gmra.mxu0 %v853
        %v990 = vpop.f32.mrf.mxu0
        %v991 = vadd.f32 %v821, %v990
        %v992 = vpop.f32.mrf.mxu0
        %v993 = vadd.f32 %v825, %v992
        %994 = vmatprep.mubr.f32.mxu0 0.0
        %995 = vmatmul.mubr.f32.gmra.mxu0 %v856
        %v996 = vpop.f32.mrf.mxu0
        %v997 = vadd.f32 %v821, %v996
        %v998 = vpop.f32.mrf.mxu0
        %v999 = vadd.f32 %v825, %v998
        %1000 = vmatprep.mubr.f32.mxu0 0.0
        %1001 = vmatmul.mubr.f32.gmra.mxu0 %v859
        %v1002 = vpop.f32.mrf.mxu0
        %v1003 = vadd.f32 %v821, %v1002
        %v1004 = vpop.f32.mrf.mxu0
        %v1005 = vadd.f32 %v825, %v1004
        %1006 = vmatprep.mubr.f32.mxu0 0.0
        %1007 = vmatmul.mubr.f32.gmra.mxu0 %v862
        %v1008 = vpop.f32.mrf.mxu0
        %v1009 = vadd.f32 %v821, %v1008
        %v1010 = vpop.f32.mrf.mxu0
        %v1011 = vadd.f32 %v825, %v1010
        %1012 = vmatprep.mubr.f32.mxu0 0.0
        %1013 = vmatmul.mubr.f32.gmra.mxu0 %v865
        %v1014 = vpop.f32.mrf.mxu0
        %v1015 = vadd.f32 %v821, %v1014
        %v1016 = vpop.f32.mrf.mxu0
        %v1017 = vadd.f32 %v825, %v1016
        %1018 = vmatprep.mubr.f32.mxu0 0.0
        %1019 = vmatmul.mubr.f32.gmra.mxu0 %v868
        %v1020 = vpop.f32.mrf.mxu0
        %v1021 = vadd.f32 %v821, %v1020
        %v1022 = vpop.f32.mrf.mxu0
        %v1023 = vadd.f32 %v825, %v1022
        %1024 = vmatprep.mubr.f32.mxu0 0.0
        %1025 = vmatmul.mubr.f32.gmra.mxu0 %v871
        %v1026 = vpop.f32.mrf.mxu0
        %v1027 = vadd.f32 %v821, %v1026
        %v1028 = vpop.f32.mrf.mxu0
        %v1029 = vadd.f32 %v825, %v1028
        %1030 = vmatprep.mubr.f32.mxu0 0.0
        %1031 = vmatmul.mubr.f32.gmra.mxu0 %v874
        %v1032 = vpop.f32.mrf.mxu0
        %v1033 = vadd.f32 %v821, %v1032
        %v1034 = vpop.f32.mrf.mxu0
        %v1035 = vadd.f32 %v825, %v1034
        %1036 = vdwg.mxu0
        %v1037 = vmax.f32 %v943, %v945
        %1038 = vmax.xlane.f32.xlu0 %v1037
        %v1039 = vpop.xlane.xlu0 %1038
        %v1040 = vmax.f32 %v949, %v951
        %1041 = vmax.xlane.f32.xlu0 %v1040
        %v1042 = vpop.xlane.xlu0 %1041
        %v1043 = vmax.f32 %v955, %v957
        %1044 = vmax.xlane.f32.xlu0 %v1043
        %v1045 = vpop.xlane.xlu0 %1044
        %v1046 = vmax.f32 %v961, %v963
        %1047 = vmax.xlane.f32.xlu0 %v1046
        %v1048 = vpop.xlane.xlu0 %1047
        %v1049 = vmax.f32 %v967, %v969
        %1050 = vmax.xlane.f32.xlu0 %v1049
        %v1051 = vpop.xlane.xlu0 %1050
        %v1052 = vmax.f32 %v973, %v975
        %1053 = vmax.xlane.f32.xlu0 %v1052
        %v1054 = vpop.xlane.xlu0 %1053
        %v1055 = vmax.f32 %v979, %v981
        %1056 = vmax.xlane.f32.xlu0 %v1055
        %v1057 = vpop.xlane.xlu0 %1056
        %v1058 = vmax.f32 %v985, %v987
        %1059 = vmax.xlane.f32.xlu0 %v1058
        %v1060 = vpop.xlane.xlu0 %1059
        %v1061 = vmax.f32 %v991, %v993
        %1062 = vmax.xlane.f32.xlu0 %v1061
        %v1063 = vpop.xlane.xlu0 %1062
        %v1064 = vmax.f32 %v997, %v999
        %1065 = vmax.xlane.f32.xlu0 %v1064
        %v1066 = vpop.xlane.xlu0 %1065
        %v1067 = vmax.f32 %v1003, %v1005
        %1068 = vmax.xlane.f32.xlu0 %v1067
        %v1069 = vpop.xlane.xlu0 %1068
        %v1070 = vmax.f32 %v1009, %v1011
        %1071 = vmax.xlane.f32.xlu0 %v1070
        %v1072 = vpop.xlane.xlu0 %1071
        %v1073 = vmax.f32 %v1015, %v1017
        %1074 = vmax.xlane.f32.xlu0 %v1073
        %v1075 = vpop.xlane.xlu0 %1074
        %v1076 = vmax.f32 %v1021, %v1023
        %1077 = vmax.xlane.f32.xlu0 %v1076
        %v1078 = vpop.xlane.xlu0 %1077
        %v1079 = vmax.f32 %v1027, %v1029
        %1080 = vmax.xlane.f32.xlu0 %v1079
        %v1081 = vpop.xlane.xlu0 %1080
        %v1082 = vmax.f32 %v1033, %v1035
        %1083 = vmax.xlane.f32.xlu0 %v1082
        %v1084 = vpop.xlane.xlu0 %1083
        %v1085 = vsub.f32 %v943, %v1039
        %v1086 = vsub.f32 %v945, %v1039
        %v1087 = vsub.f32 %v949, %v1042
        %v1088 = vsub.f32 %v951, %v1042
        %v1089 = vsub.f32 %v955, %v1045
        %v1090 = vsub.f32 %v957, %v1045
        %v1091 = vsub.f32 %v961, %v1048
        %v1092 = vsub.f32 %v963, %v1048
        %v1093 = vsub.f32 %v967, %v1051
        %v1094 = vsub.f32 %v969, %v1051
        %v1095 = vsub.f32 %v973, %v1054
        %v1096 = vsub.f32 %v975, %v1054
        %v1097 = vsub.f32 %v979, %v1057
        %v1098 = vsub.f32 %v981, %v1057
        %v1099 = vsub.f32 %v985, %v1060
        %v1100 = vsub.f32 %v987, %v1060
        %v1101 = vsub.f32 %v991, %v1063
        %v1102 = vsub.f32 %v993, %v1063
        %v1103 = vsub.f32 %v997, %v1066
        %v1104 = vsub.f32 %v999, %v1066
        %v1105 = vsub.f32 %v1003, %v1069
        %v1106 = vsub.f32 %v1005, %v1069
        %v1107 = vsub.f32 %v1009, %v1072
        %v1108 = vsub.f32 %v1011, %v1072
        %v1109 = vsub.f32 %v1015, %v1075
        %v1110 = vsub.f32 %v1017, %v1075
        %v1111 = vsub.f32 %v1021, %v1078
        %v1112 = vsub.f32 %v1023, %v1078
        %v1113 = vsub.f32 %v1027, %v1081
        %v1114 = vsub.f32 %v1029, %v1081
        %v1115 = vsub.f32 %v1033, %v1084
        %v1116 = vsub.f32 %v1035, %v1084
        %v1117 = vmul.f32 %v1085, 1.442695
        %v1118 = vpow.pop %v1117
        %v1119 = vmul.f32 %v1086, 1.442695
        %v1120 = vpow.pop %v1119
        %v1121 = vmul.f32 %v1087, 1.442695
        %v1122 = vpow.pop %v1121
        %v1123 = vmul.f32 %v1088, 1.442695
        %v1124 = vpow.pop %v1123
        %v1125 = vmul.f32 %v1089, 1.442695
        %v1126 = vpow.pop %v1125
        %v1127 = vmul.f32 %v1090, 1.442695
        %v1128 = vpow.pop %v1127
        %v1129 = vmul.f32 %v1091, 1.442695
        %v1130 = vpow.pop %v1129
        %v1131 = vmul.f32 %v1092, 1.442695
        %v1132 = vpow.pop %v1131
        %v1133 = vmul.f32 %v1093, 1.442695
        %v1134 = vpow.pop %v1133
        %v1135 = vmul.f32 %v1094, 1.442695
        %v1136 = vpow.pop %v1135
        %v1137 = vmul.f32 %v1095, 1.442695
        %v1138 = vpow.pop %v1137
        %v1139 = vmul.f32 %v1096, 1.442695
        %v1140 = vpow.pop %v1139
        %v1141 = vmul.f32 %v1097, 1.442695
        %v1142 = vpow.pop %v1141
        %v1143 = vmul.f32 %v1098, 1.442695
        %v1144 = vpow.pop %v1143
        %v1145 = vmul.f32 %v1099, 1.442695
        %v1146 = vpow.pop %v1145
        %v1147 = vmul.f32 %v1100, 1.442695
        %v1148 = vpow.pop %v1147
        %v1149 = vmul.f32 %v1101, 1.442695
        %v1150 = vpow.pop %v1149
        %v1151 = vmul.f32 %v1102, 1.442695
        %v1152 = vpow.pop %v1151
        %v1153 = vmul.f32 %v1103, 1.442695
        %v1154 = vpow.pop %v1153
        %v1155 = vmul.f32 %v1104, 1.442695
        %v1156 = vpow.pop %v1155
        %v1157 = vmul.f32 %v1105, 1.442695
        %v1158 = vpow.pop %v1157
        %v1159 = vmul.f32 %v1106, 1.442695
        %v1160 = vpow.pop %v1159
        %v1161 = vmul.f32 %v1107, 1.442695
        %v1162 = vpow.pop %v1161
        %v1163 = vmul.f32 %v1108, 1.442695
        %v1164 = vpow.pop %v1163
        %v1165 = vmul.f32 %v1109, 1.442695
        %v1166 = vpow.pop %v1165
        %v1167 = vmul.f32 %v1110, 1.442695
        %v1168 = vpow.pop %v1167
        %v1169 = vmul.f32 %v1111, 1.442695
        %v1170 = vpow.pop %v1169
        %v1171 = vmul.f32 %v1112, 1.442695
        %v1172 = vpow.pop %v1171
        %v1173 = vmul.f32 %v1113, 1.442695
        %v1174 = vpow.pop %v1173
        %v1175 = vmul.f32 %v1114, 1.442695
        %v1176 = vpow.pop %v1175
        %v1177 = vmul.f32 %v1115, 1.442695
        %v1178 = vpow.pop %v1177
        %v1179 = vmul.f32 %v1116, 1.442695
        %v1180 = vpow.pop %v1179
        %v1181 = vadd.f32 %v1118, %v1120
        %1182 = vadd.xlane.f32.xlu0 %v1181
        %v1183 = vpop.xlane.xlu0 %1182
        %v1184 = vadd.f32 %v1122, %v1124
        %1185 = vadd.xlane.f32.xlu0 %v1184
        %v1186 = vpop.xlane.xlu0 %1185
        %v1187 = vadd.f32 %v1126, %v1128
        %1188 = vadd.xlane.f32.xlu0 %v1187
        %v1189 = vpop.xlane.xlu0 %1188
        %v1190 = vadd.f32 %v1130, %v1132
        %1191 = vadd.xlane.f32.xlu0 %v1190
        %v1192 = vpop.xlane.xlu0 %1191
        %v1193 = vadd.f32 %v1134, %v1136
        %1194 = vadd.xlane.f32.xlu0 %v1193
        %v1195 = vpop.xlane.xlu0 %1194
        %v1196 = vadd.f32 %v1138, %v1140
        %1197 = vadd.xlane.f32.xlu0 %v1196
        %v1198 = vpop.xlane.xlu0 %1197
        %v1199 = vadd.f32 %v1142, %v1144
        %1200 = vadd.xlane.f32.xlu0 %v1199
        %v1201 = vpop.xlane.xlu0 %1200
        %v1202 = vadd.f32 %v1146, %v1148
        %1203 = vadd.xlane.f32.xlu0 %v1202
        %v1204 = vpop.xlane.xlu0 %1203
        %v1205 = vadd.f32 %v1150, %v1152
        %1206 = vadd.xlane.f32.xlu0 %v1205
        %v1207 = vpop.xlane.xlu0 %1206
        %v1208 = vadd.f32 %v1154, %v1156
        %1209 = vadd.xlane.f32.xlu0 %v1208
        %v1210 = vpop.xlane.xlu0 %1209
        %v1211 = vadd.f32 %v1158, %v1160
        %1212 = vadd.xlane.f32.xlu0 %v1211
        %v1213 = vpop.xlane.xlu0 %1212
        %v1214 = vadd.f32 %v1162, %v1164
        %1215 = vadd.xlane.f32.xlu0 %v1214
        %v1216 = vpop.xlane.xlu0 %1215
        %v1217 = vadd.f32 %v1166, %v1168
        %1218 = vadd.xlane.f32.xlu0 %v1217
        %v1219 = vpop.xlane.xlu0 %1218
        %v1220 = vadd.f32 %v1170, %v1172
        %1221 = vadd.xlane.f32.xlu0 %v1220
        %v1222 = vpop.xlane.xlu0 %1221
        %v1223 = vadd.f32 %v1174, %v1176
        %1224 = vadd.xlane.f32.xlu0 %v1223
        %v1225 = vpop.xlane.xlu0 %1224
        %v1226 = vadd.f32 %v1178, %v1180
        %1227 = vadd.xlane.f32.xlu0 %v1226
        %v1228 = vpop.xlane.xlu0 %1227
        %v1229 = vrcp.pop %v1183
        %v1230 = vrcp.pop %v1186
        %v1231 = vrcp.pop %v1189
        %v1232 = vrcp.pop %v1192
        %v1233 = vrcp.pop %v1195
        %v1234 = vrcp.pop %v1198
        %v1235 = vrcp.pop %v1201
        %v1236 = vrcp.pop %v1204
        %v1237 = vrcp.pop %v1207
        %v1238 = vrcp.pop %v1210
        %v1239 = vrcp.pop %v1213
        %v1240 = vrcp.pop %v1216
        %v1241 = vrcp.pop %v1219
        %v1242 = vrcp.pop %v1222
        %v1243 = vrcp.pop %v1225
        %v1244 = vrcp.pop %v1228
        %v1245 = vmul.f32 %v1118, %v1229
        %v1246 = vmul.f32 %v1120, %v1229
        %v1247 = vmul.f32 %v1122, %v1230
        %v1248 = vmul.f32 %v1124, %v1230
        %v1249 = vmul.f32 %v1126, %v1231
        %v1250 = vmul.f32 %v1128, %v1231
        %v1251 = vmul.f32 %v1130, %v1232
        %v1252 = vmul.f32 %v1132, %v1232
        %v1253 = vmul.f32 %v1134, %v1233
        %v1254 = vmul.f32 %v1136, %v1233
        %v1255 = vmul.f32 %v1138, %v1234
        %v1256 = vmul.f32 %v1140, %v1234
        %v1257 = vmul.f32 %v1142, %v1235
        %v1258 = vmul.f32 %v1144, %v1235
        %v1259 = vmul.f32 %v1146, %v1236
        %v1260 = vmul.f32 %v1148, %v1236
        %v1261 = vmul.f32 %v1150, %v1237
        %v1262 = vmul.f32 %v1152, %v1237
        %v1263 = vmul.f32 %v1154, %v1238
        %v1264 = vmul.f32 %v1156, %v1238
        %v1265 = vmul.f32 %v1158, %v1239
        %v1266 = vmul.f32 %v1160, %v1239
        %v1267 = vmul.f32 %v1162, %v1240
        %v1268 = vmul.f32 %v1164, %v1240
        %v1269 = vmul.f32 %v1166, %v1241
        %v1270 = vmul.f32 %v1168, %v1241
        %v1271 = vmul.f32 %v1170, %v1242
        %v1272 = vmul.f32 %v1172, %v1242
        %v1273 = vmul.f32 %v1174, %v1243
        %v1274 = vmul.f32 %v1176, %v1243
        %v1275 = vmul.f32 %v1178, %v1244
        %v1276 = vmul.f32 %v1180, %v1244
        %1277 = vst [vmem:[%s339] sm:$0xff] %v1245
        %1278 = vst [vmem:[%s339 + $0x8] sm:$0xff] %v1246
        %1279 = vst [vmem:[%s339 + $0x10] sm:$0xff] %v1247
        %1280 = vst [vmem:[%s339 + $0x18] sm:$0xff] %v1248
        %1281 = vst [vmem:[%s339 + $0x20] sm:$0xff] %v1249
        %1282 = vst [vmem:[%s339 + $0x28] sm:$0xff] %v1250
        %1283 = vst [vmem:[%s339 + $0x30] sm:$0xff] %v1251
        %1284 = vst [vmem:[%s339 + $0x38] sm:$0xff] %v1252
        %1285 = vst [vmem:[%s339 + $0x40] sm:$0xff] %v1253
        %1286 = vst [vmem:[%s339 + $0x48] sm:$0xff] %v1254
        %1287 = vst [vmem:[%s339 + $0x50] sm:$0xff] %v1255
        %1288 = vst [vmem:[%s339 + $0x58] sm:$0xff] %v1256
        %1289 = vst [vmem:[%s339 + $0x60] sm:$0xff] %v1257
        %1290 = vst [vmem:[%s339 + $0x68] sm:$0xff] %v1258
        %1291 = vst [vmem:[%s339 + $0x70] sm:$0xff] %v1259
        %1292 = vst [vmem:[%s339 + $0x78] sm:$0xff] %v1260
        %1293 = vst [vmem:[%s339 + $0x80] sm:$0xff] %v1261
        %1294 = vst [vmem:[%s339 + $0x88] sm:$0xff] %v1262
        %1295 = vst [vmem:[%s339 + $0x90] sm:$0xff] %v1263
        %1296 = vst [vmem:[%s339 + $0x98] sm:$0xff] %v1264
        %1297 = vst [vmem:[%s339 + $0xa0] sm:$0xff] %v1265
        %1298 = vst [vmem:[%s339 + $0xa8] sm:$0xff] %v1266
        %1299 = vst [vmem:[%s339 + $0xb0] sm:$0xff] %v1267
        %1300 = vst [vmem:[%s339 + $0xb8] sm:$0xff] %v1268
        %1301 = vst [vmem:[%s339 + $0xc0] sm:$0xff] %v1269
        %1302 = vst [vmem:[%s339 + $0xc8] sm:$0xff] %v1270
        %1303 = vst [vmem:[%s339 + $0xd0] sm:$0xff] %v1271
        %1304 = vst [vmem:[%s339 + $0xd8] sm:$0xff] %v1272
        %1305 = vst [vmem:[%s339 + $0xe0] sm:$0xff] %v1273
        %1306 = vst [vmem:[%s339 + $0xe8] sm:$0xff] %v1274
        %1307 = vst [vmem:[%s339 + $0xf0] sm:$0xff] %v1275
        %1308 = vst [vmem:[%s339 + $0xf8] sm:$0xff] %v1276
        %v1309 = vld [vmem:[#allocation2] sm:$0xff]
        %v1310 = vld [vmem:[#allocation2 + $0x8] sm:$0xff]
        %v1311 = vld [vmem:[#allocation2 + $0x10] sm:$0xff]
        %v1312 = vld [vmem:[#allocation2 + $0x18] sm:$0xff]
        %1313 = vmatprep.subr.mxu0 %v1276
        %1314 = vmatpush1.xpose.msra.mxu0 %v1275
        %1315 = vmatprep.subr.mxu0 %v1274
        %1316 = vmatpush1.xpose.msra.mxu0 %v1273
        %1317 = vmatprep.subr.mxu0 %v1272
        %1318 = vmatpush1.xpose.msra.mxu0 %v1271
        %1319 = vmatprep.subr.mxu0 %v1270
        %1320 = vmatpush1.xpose.msra.mxu0 %v1269
        %1321 = vmatprep.subr.mxu0 %v1268
        %1322 = vmatpush1.xpose.msra.mxu0 %v1267
        %1323 = vmatprep.subr.mxu0 %v1266
        %1324 = vmatpush1.xpose.msra.mxu0 %v1265
        %1325 = vmatprep.subr.mxu0 %v1264
        %1326 = vmatpush1.xpose.msra.mxu0 %v1263
        %1327 = vmatprep.subr.mxu0 %v1262
        %1328 = vmatpush1.xpose.msra.mxu0 %v1261
        %1329 = vmatprep.subr.mxu0 %v1260
        %1330 = vmatpush1.xpose.msra.mxu0 %v1259
        %1331 = vmatprep.subr.mxu0 %v1258
        %1332 = vmatpush1.xpose.msra.mxu0 %v1257
        %1333 = vmatprep.subr.mxu0 %v1256
        %1334 = vmatpush1.xpose.msra.mxu0 %v1255
        %1335 = vmatprep.subr.mxu0 %v1254
        %1336 = vmatpush1.xpose.msra.mxu0 %v1253
        %1337 = vmatprep.subr.mxu0 %v1252
        %1338 = vmatpush1.xpose.msra.mxu0 %v1251
        %1339 = vmatprep.subr.mxu0 %v1250
        %1340 = vmatpush1.xpose.msra.mxu0 %v1249
        %1341 = vmatprep.subr.mxu0 %v1248
        %1342 = vmatpush1.xpose.msra.mxu0 %v1247
        %1343 = vmatprep.subr.mxu0 %v1246
        %1344 = vmatpush1.xpose.msra.mxu0 %v1245
        %1345 = vmatprep.subr.mxu0 0.0
        %1346 = vmatpush2.xpose.msra.mxu0 0.0
        %1347 = vmatprep.subr.mxu0 0.0
        %1348 = vmatpush2.xpose.msra.mxu0 0.0
        %1349 = vmatprep.subr.mxu0 0.0
        %1350 = vmatpush2.xpose.msra.mxu0 0.0
        %1351 = vmatprep.subr.mxu0 0.0
        %1352 = vmatpush2.xpose.msra.mxu0 0.0
        %1353 = vmatprep.subr.mxu0 0.0
        %1354 = vmatpush2.xpose.msra.mxu0 0.0
        %1355 = vmatprep.subr.mxu0 0.0
        %1356 = vmatpush2.xpose.msra.mxu0 0.0
        %1357 = vmatprep.subr.mxu0 0.0
        %1358 = vmatpush2.xpose.msra.mxu0 0.0
        %1359 = vmatprep.subr.mxu0 0.0
        %1360 = vmatpush2.xpose.msra.mxu0 0.0
        %1361 = vmatprep.subr.mxu0 0.0
        %1362 = vmatpush2.xpose.msra.mxu0 0.0
        %1363 = vmatprep.subr.mxu0 0.0
        %1364 = vmatpush2.xpose.msra.mxu0 0.0
        %1365 = vmatprep.subr.mxu0 0.0
        %1366 = vmatpush2.xpose.msra.mxu0 0.0
        %1367 = vmatprep.subr.mxu0 0.0
        %1368 = vmatpush2.xpose.msra.mxu0 0.0
        %1369 = vmatprep.subr.mxu0 0.0
        %1370 = vmatpush2.xpose.msra.mxu0 0.0
        %1371 = vmatprep.subr.mxu0 0.0
        %1372 = vmatpush2.xpose.msra.mxu0 0.0
        %1373 = vmatprep.subr.mxu0 0.0
        %1374 = vmatpush2.xpose.msra.mxu0 0.0
        %1375 = vmatprep.subr.mxu0 0.0
        %1376 = vmatpush2.xpose.msra.mxu0 0.0
        %1377 = vmatprep.mubr.f32.mxu0 %v1310
        %1378 = vmatmul.mubr.f32.gmra.mxu0 %v1309
        %v1379 = vpop.f32.mrf.mxu0
        %v1380 = vadd.f32 0.0, %v1379
        %v1381 = vpop.f32.mrf.mxu0
        %1382 = vmatprep.mubr.f32.mxu0 %v1312
        %1383 = vmatmul.mubr.f32.gmra.mxu0 %v1311
        %v1384 = vpop.f32.mrf.mxu0
        %v1385 = vadd.f32 0.0, %v1384
        %v1386 = vpop.f32.mrf.mxu0
        %1387 = vdwg.mxu0
        %s1388 = sld [smem:[#allocation4]]
        %v1389 = vstv %s1388
        %v1390 = vmul.f32 %v1389, %v1380
        %v1391 = vmul.f32 %v1389, %v1385
        %v1392 = vadd.f32 %v1390, %v586
        %v1393 = vadd.f32 %v1391, %v587
        %1394 = vst [vmem:[%s332] sm:$0xff] %v1392
        %1395 = vst [vmem:[%s332 + $0x8] sm:$0xff] %v1393
        %s1396 = sand.u32 %s183, 1
        %s1397 = scalar_lea.sflag [#allocation7], %s1396
        %s1398 = sand.u32 %s183, 1
        %s1399 = smul.addr %s1398, 16
        %s1400 = scalar_lea.vmem [#allocation10], %s1399
        %s1401 = sand.u32 %s211, 1
        %s1402 = scalar_lea.sflag [#allocation12], %s1401
        %s1403 = sand.u32 %s211, 1
        %s1404 = smul.addr %s1403, 256
        %s1405 = scalar_lea.vmem [#allocation11], %s1404
        // Predicated region
        $region57: #{tpu_custom_call.1} parent=43 // pred_check
          %p1406 = pneg %p193
        $region58: #{tpu_custom_call.1} parent=43 // pred_check_branch
          %1408 = sbr.rel (%p1406) target = $region60
        $region59: #{tpu_custom_call.1} parent=43 // pred_region
          %s1410 = ssub.s32 256, 256
          %1411 = vsyncadd %s1397, %s1410
          %s1412 = smul.addr %s34, 4
          %s1413 = sadd.s32 %s35, %s1412
          %s1414 = smul.addr %s1413, 128
          %s1415 = scalar_lea.hbm %s6, %s1414
          %s1416 = sshll.u32 %s1400, 4
          %s1417 = int_to_ptr.vmem [resolvable:$true] %s1416
          %1422 = dma.vmem_to_hbm [thread:$0]  %s1417, 256, %s1415, %s1397, 128, 256, 8
        $region60: #{tpu_custom_call.1} parent=43 // pred_fallthru
          _
        // Predicated region
        $region61: #{tpu_custom_call.1} parent=43 // pred_check
          %p1423 = pneg %p221
        $region62: #{tpu_custom_call.1} parent=43 // pred_check_branch
          %1425 = sbr.rel (%p1423) target = $region64
        $region63: #{tpu_custom_call.1} parent=43 // pred_region
          %s1426 = smul.u32 16, %s35
          %s1428 = ssub.s32 4096, 4096
          %1429 = vsyncadd %s1402, %s1428
          %s1430 = smul.addr %s1426, 2
          %s1431 = smul.addr %s34, 64
          %s1432 = sadd.s32 %s1430, %s1431
          %s1433 = smul.addr %s1432, 128
          %s1434 = scalar_lea.hbm %s7, %s1433
          %s1435 = sshll.u32 %s1405, 4
          %s1436 = int_to_ptr.vmem [resolvable:$true] %s1435
          %1441 = dma.vmem_to_hbm [thread:$0]  %s1436, 4096, %s1434, %s1402, 256, 256, 16
        $region64: #{tpu_custom_call.1} parent=43 // pred_fallthru
          _
      $region44: #{tpu_custom_call.1} parent=5 // pred_fallthru
        _
      %p1442 = scmp.le.s32.totalorder 2, %s25
      // Predicated region
      $region65: #{tpu_custom_call.1} parent=5 // pred_check
        %p1443 = pneg %p1442
      $region66: #{tpu_custom_call.1} parent=5 // pred_check_branch
        %1445 = sbr.rel (%p1443) target = $region68
      $region67: #{tpu_custom_call.1} parent=5 // pred_region
        %s1446 = ssub.s32 %s25, 2
        // Predicated region
        $region69: #{tpu_custom_call.1} parent=67 // pred_check
          %p1447 = pneg %p199
        $region70: #{tpu_custom_call.1} parent=67 // pred_check_branch
          %1449 = sbr.rel (%p1447) target = $region72
        $region71: #{tpu_custom_call.1} parent=67 // pred_region
          %s1450 = sand.u32 %s184, 1
          %s1451 = scalar_lea.sflag [#allocation7], %s1450
          %s1452 = sand.u32 %s184, 1
          %s1453 = smul.addr %s1452, 16
          %s1454 = scalar_lea.vmem [#allocation10], %s1453
          %1455 = dma.done %s1451, 256
        $region72: #{tpu_custom_call.1} parent=67 // pred_fallthru
          _
        // Predicated region
        $region73: #{tpu_custom_call.1} parent=67 // pred_check
          %p1456 = pneg %p227
        $region74: #{tpu_custom_call.1} parent=67 // pred_check_branch
          %1458 = sbr.rel (%p1456) target = $region76
        $region75: #{tpu_custom_call.1} parent=67 // pred_region
          %s1459 = sand.u32 %s212, 1
          %s1460 = scalar_lea.sflag [#allocation12], %s1459
          %s1461 = sand.u32 %s212, 1
          %s1462 = smul.addr %s1461, 256
          %s1463 = scalar_lea.vmem [#allocation11], %s1462
          %1464 = dma.done %s1460, 4096
        $region76: #{tpu_custom_call.1} parent=67 // pred_fallthru
          _
      $region68: #{tpu_custom_call.1} parent=5 // pred_fallthru
        _
    $region6: #{tpu_custom_call.1} parent=1 // loop_footer
      %s29 = sadd.s32 1, %s25
    $region7: #{tpu_custom_call.1} parent=1 // loop_footer_branch
      %24 = sbr.rel target = $region3
    $region8: #{tpu_custom_call.1} parent=1 // loop_exit
      _
    %1465 = vsyncpa [#allocation6], 1
    %s1466 = scalar_lea.sflag [#allocation6], 1
    %1467 = vsyncpa %s1466, 1
    %1468 = vsyncpa [#allocation9], 1
    %1469 = vsyncpa [#allocation7], 1
    %s1470 = scalar_lea.sflag [#allocation7], 1
    %1471 = vsyncpa %s1470, 1
    %1472 = vsyncpa [#allocation12], 1
    %s1473 = scalar_lea.sflag [#allocation12], 1
    %1474 = vsyncpa %s1473, 1

</llo_original>
